<compile_context>
chip_gen: v7x
topology: tpu7x:2x2x1
jax: 0.10.0
libtpu: 0.0.40
codegen_flags: <defaults>
</compile_context>

<pallas_src>
import functools

import jax
import jax.numpy as jnp
from jax import lax
from jax.experimental import pallas as pl
from jax.experimental.pallas import tpu as pltpu

LANES = 128
N_BITS = 31            # |x| bit patterns are non-negative int32 -> bits 30..0
CHUNK_ROWS = 2048      # 1 MiB f32 per streamed input chunk
INT32_MAX = 0x7FFFFFFF


def _observer_kernel(prev_min_ref, prev_max_ref, flag_ref, k_ref, x_ref,
                     min_out_ref, max_out_ref,
                     bits_ref, minval_ref,
                     *, momentum, n_valid, chunk_rows, n_chunks):
    """grid=(n_chunks,): each step converts one f32 chunk into the resident
    int32 bits scratch; the last step runs the full 31-bit binary search."""
    c = pl.program_id(0)
    total_rows = n_chunks * chunk_rows

    @pl.when(c == 0)
    def _init():
        minval_ref[0] = jnp.float32(jnp.inf)

    # ---- convert this chunk: |x| bit pattern -> resident int32 scratch -------
    x = x_ref[...]                                    # (chunk_rows, 128) f32
    a_bits = pltpu.bitcast(jnp.abs(x), jnp.int32)
    if n_chunks == 1:
        row0 = 0
    else:
        row0 = pl.multiple_of(c * chunk_rows, chunk_rows)

    needs_mask = (n_valid != total_rows * LANES)      # static trace-time branch
    if needs_mask:
        @pl.when(c == n_chunks - 1)
        def _tail_chunk():
            base = (n_chunks - 1) * chunk_rows * LANES
            row_i = lax.broadcasted_iota(jnp.int32, (chunk_rows, LANES), 0)
            lane_i = lax.broadcasted_iota(jnp.int32, (chunk_rows, LANES), 1)
            valid = (base + row_i * LANES + lane_i) < n_valid
            # invalid lanes -> INT32_MAX so strict '<' never counts them
            bits_ref[pl.ds(row0, chunk_rows), :] = jnp.where(
                valid, a_bits, jnp.int32(INT32_MAX))
            minval_ref[0] = jnp.minimum(
                minval_ref[0], jnp.min(jnp.where(valid, x, jnp.inf)))

        @pl.when(c != n_chunks - 1)
        def _full_chunk():
            bits_ref[pl.ds(row0, chunk_rows), :] = a_bits
            minval_ref[0] = jnp.minimum(minval_ref[0], jnp.min(x))
    else:
        bits_ref[pl.ds(row0, chunk_rows), :] = a_bits
        minval_ref[0] = jnp.minimum(minval_ref[0], jnp.min(x))

    # ---- last chunk: binary search + first-call / EMA update -----------------
    @pl.when(c == n_chunks - 1)
    def _finalize():
        k = k_ref[0]

        def count_lt(t):
            lt = jnp.where(bits_ref[...] < t, jnp.int32(1), jnp.int32(0))
            if total_rows % 8 == 0 and total_rows > 8:
                # VALU accumulation across vreg rows, single XLU reduce at end.
                part = jnp.sum(lt.reshape(total_rows // 8, 8, LANES), axis=0)
                return jnp.sum(part)
            return jnp.sum(lt)

        def bit_step(i, prefix):
            # Invariant: prefix agrees with the k-th smallest bit pattern on all
            # bits above the current one and is zero below.
            t = prefix | (jnp.int32(1) << (jnp.int32(N_BITS - 1) - i))
            # fewer than k elements below t  =>  k-th value >= t  => bit is 1
            return jnp.where(count_lt(t) < k, t, prefix)

        kth_bits = lax.fori_loop(0, N_BITS, bit_step, jnp.int32(0), unroll=True)
        # Recover the float by bit-casting the prefix (exact for non-negative f32).
        max_cur = jnp.max(pltpu.bitcast(
            jnp.full((8, LANES), kth_bits, jnp.int32), jnp.float32))
        min_cur = minval_ref[0]

        is_first = flag_ref[0] == 0
        m = jnp.float32(momentum)
        max_out_ref[0] = jnp.where(
            is_first, max_cur, (1.0 - m) * prev_max_ref[0] + m * max_cur)
        min_out_ref[0] = jnp.where(
            is_first, min_cur, (1.0 - m) * prev_min_ref[0] + m * min_cur)


def histogram_observe(x, prev_min, prev_max, flag, momentum=0.1, percentile=0.9999):
    """One observer step. Returns (new_min, new_max), each shape (1,) f32."""
    xf = jnp.ravel(x).astype(jnp.float32)
    n = int(xf.shape[0])
    k = int(percentile * n)               # matches torch.kthvalue's 1-indexed k
    assert k >= 1, "percentile * numel must be >= 1 (torch.kthvalue requirement)"

    rows = (n + LANES - 1) // LANES
    pad = rows * LANES - n
    if pad:
        # Only when numel % 128 != 0; pad value irrelevant (masked in-kernel).
        xf = jnp.pad(xf, (0, pad))
    x2 = xf.reshape(rows, LANES)

    chunk_rows = rows if rows <= CHUNK_ROWS else CHUNK_ROWS
    n_chunks = (rows + chunk_rows - 1) // chunk_rows
    total_rows = n_chunks * chunk_rows

    k_arr = jnp.array([k], jnp.int32)

    # VMEM budget: resident int32 bits + double-buffered f32 chunk + headroom.
    bits_bytes = total_rows * LANES * 4
    chunk_bytes = chunk_rows * LANES * 4
    vmem_need = bits_bytes + 2 * chunk_bytes + (2 << 20)
    try:
        cap = int(pltpu.get_tpu_info().vmem_capacity_bytes) - (8 << 20)
    except Exception:
        cap = 56 << 20                    # conservative: fits v7x's 64 MiB/TC
    vmem_limit = int(min(max(vmem_need, 32 << 20), max(cap, 32 << 20)))

    kernel = functools.partial(_observer_kernel, momentum=momentum, n_valid=n,
                               chunk_rows=chunk_rows, n_chunks=n_chunks)
    new_min, new_max = pl.pallas_call(
        kernel,
        grid=(n_chunks,),
        in_specs=[
            pl.BlockSpec(memory_space=pltpu.MemorySpace.SMEM),   # prev_min (1,)
            pl.BlockSpec(memory_space=pltpu.MemorySpace.SMEM),   # prev_max (1,)
            pl.BlockSpec(memory_space=pltpu.MemorySpace.SMEM),   # num_flag (1,) int32
            pl.BlockSpec(memory_space=pltpu.MemorySpace.SMEM),   # k (1,) int32
            pl.BlockSpec((chunk_rows, LANES), lambda c: (c, 0)), # streamed f32 chunk
        ],
        out_specs=[
            pl.BlockSpec(memory_space=pltpu.MemorySpace.SMEM),
            pl.BlockSpec(memory_space=pltpu.MemorySpace.SMEM),
        ],
        out_shape=[
            jax.ShapeDtypeStruct((1,), jnp.float32),
            jax.ShapeDtypeStruct((1,), jnp.float32),
        ],
        scratch_shapes=[
            pltpu.VMEM((total_rows, LANES), jnp.int32),  # resident |x| bit patterns
            pltpu.SMEM((1,), jnp.float32),               # running min across chunks
        ],
        compiler_params=pltpu.CompilerParams(
            dimension_semantics=("arbitrary",),          # chunks are sequential
            vmem_limit_bytes=vmem_limit),
    )(prev_min, prev_max, flag, k_arr, x2)
    return new_min, new_max


class HistogramObserver:
    """Stateful wrapper mirroring the PyTorch module (buffers kept host-side)."""

    def __init__(self, momentum=0.1, percentile=0.9999):
        self.momentum = momentum
        self.percentile = percentile
        self.num_flag = 0
        self.min_val = jnp.zeros((1,), jnp.float32)
        self.max_val = jnp.zeros((1,), jnp.float32)

    def __call__(self, x):
        flag = jnp.array([self.num_flag], jnp.int32)
        new_min, new_max = histogram_observe(
            x, self.min_val, self.max_val, flag, self.momentum, self.percentile)
        if self.num_flag == 0:
            self.num_flag += 1
        self.min_val = new_min
        self.max_val = new_max
        return new_min, new_max


def _reference_step(x, prev_min, prev_max, first, momentum=0.1, percentile=0.9999):
    flat = jnp.abs(x).astype(jnp.float32).reshape(-1)
    k = int(percentile * flat.shape[0])
    kth = jnp.sort(flat)[k - 1]          # torch.kthvalue: k-th smallest (1-indexed)
    mn = jnp.min(x.astype(jnp.float32))
    if first:
        return mn, kth
    return ((1.0 - momentum) * prev_min + momentum * mn,
            (1.0 - momentum) * prev_max + momentum * kth)


if __name__ == "__main__":
    key = jax.random.PRNGKey(0)
    k1, k2 = jax.random.split(key)
    x1 = jax.random.normal(k1, (2, 4, 16, 16), jnp.float32)   # NCHW, N = 2048
    x2 = 2.0 * jax.random.normal(k2, (2, 4, 16, 16), jnp.float32)

    obs = HistogramObserver(momentum=0.1, percentile=0.9999)
    mn1, mx1 = obs(x1)          # first call: direct assignment
    mn2, mx2 = obs(x2)          # second call: EMA update
    jax.block_until_ready((mn1, mx1, mn2, mx2))

    r_mn1, r_mx1 = _reference_step(x1, None, None, True)
    r_mn2, r_mx2 = _reference_step(x2, r_mn1, r_mx1, False)

    assert jnp.allclose(mn1[0], r_mn1, atol=1e-6, rtol=1e-6), (mn1, r_mn1)
    assert jnp.allclose(mx1[0], r_mx1, atol=1e-6, rtol=1e-6), (mx1, r_mx1)
    assert jnp.allclose(mn2[0], r_mn2, atol=1e-6, rtol=1e-6), (mn2, r_mn2)
    assert jnp.allclose(mx2[0], r_mx2, atol=1e-6, rtol=1e-6), (mx2, r_mx2)

    print("KERNEL_OK")
</pallas_src>

<mosaic_0001>
module attributes {stable_mosaic.version = 11 : i64} {
  func.func @_observer_kernel(%arg0: i32, %arg1: memref<1xf32, #tpu.memory_space<smem>>, %arg2: memref<1xf32, #tpu.memory_space<smem>>, %arg3: memref<1xi32, #tpu.memory_space<smem>>, %arg4: memref<1xi32, #tpu.memory_space<smem>>, %arg5: memref<16x128xf32, #tpu.memory_space<vmem>>, %arg6: memref<1xf32, #tpu.memory_space<smem>>, %arg7: memref<1xf32, #tpu.memory_space<smem>>, %arg8: memref<16x128xi32, #tpu.memory_space<vmem>>, %arg9: memref<1xf32, #tpu.memory_space<smem>>) attributes {dimension_semantics = [#tpu.dimension_semantics<arbitrary>], iteration_bounds = array<i64: 1>, scalar_prefetch = 0 : i64, scratch_operands = 2 : i64, tpu.core_type = #tpu.core_type<tc>, window_params = [{transform_indices = @transform_0, window_bounds = array<i64: 1>}, {transform_indices = @transform_1, window_bounds = array<i64: 1>}, {transform_indices = @transform_2, window_bounds = array<i64: 1>}, {transform_indices = @transform_3, window_bounds = array<i64: 1>}, {transform_indices = @transform_4, window_bounds = array<i64: 16, 128>}, {transform_indices = @transform_5, window_bounds = array<i64: 1>}, {transform_indices = @transform_6, window_bounds = array<i64: 1>}]} {
    %c0_i32 = arith.constant 0 : i32
    %0 = arith.cmpi eq, %arg0, %c0_i32 : i32
    %1 = arith.extui %0 : i1 to i32
    %c0_i32_0 = arith.constant 0 : i32
    %2 = arith.cmpi ne, %1, %c0_i32_0 : i32
    scf.if %2 {
      %cst_8 = arith.constant 0x7F800000 : f32
      %c0_9 = arith.constant 0 : index
      %17 = memref.load %arg9[%c0_9] : memref<1xf32, #tpu.memory_space<smem>>
      memref.store %cst_8, %arg9[%c0_9] : memref<1xf32, #tpu.memory_space<smem>>
    } else {
    }
    %c0 = arith.constant 0 : index
    %c0_1 = arith.constant 0 : index
    %3 = vector.load %arg5[%c0, %c0_1] : memref<16x128xf32, #tpu.memory_space<vmem>>, vector<16x128xf32>
    %4 = math.absf %3 : vector<16x128xf32>
    %5 = tpu.bitcast %4 : vector<16x128xf32> -> vector<16x128xi32>
    %c0_2 = arith.constant 0 : index
    %c0_3 = arith.constant 0 : index
    %6 = vector.load %arg8[%c0_2, %c0_3] : memref<16x128xi32, #tpu.memory_space<vmem>>, vector<16x128xi32>
    tpu.vector_store %arg8[%c0_2, %c0_3], %5 {strides = array<i32>} : memref<16x128xi32, #tpu.memory_space<vmem>>, vector<16x128xi32>,
    %c0_4 = arith.constant 0 : index
    %7 = memref.load %arg9[%c0_4] : memref<1xf32, #tpu.memory_space<smem>>
    %8 = vector.shape_cast %3 : vector<16x128xf32> to vector<1x16x128xf32>
    %cst = arith.constant dense<0x7F800000> : vector<1xf32>
    %9 = vector.multi_reduction <minimumf>, %8, %cst [1, 2] : vector<1x16x128xf32> to vector<1xf32>
    %10 = vector.shape_cast %9 : vector<1xf32> to vector<1x1x1xf32>
    %11 = vector.extract %10[0, 0, 0] : f32 from vector<1x1x1xf32>
    %12 = arith.minimumf %7, %11 : f32
    %c0_5 = arith.constant 0 : index
    %13 = memref.load %arg9[%c0_5] : memref<1xf32, #tpu.memory_space<smem>>
    memref.store %12, %arg9[%c0_5] : memref<1xf32, #tpu.memory_space<smem>>
    %c0_i32_6 = arith.constant 0 : i32
    %14 = arith.cmpi eq, %arg0, %c0_i32_6 : i32
    %15 = arith.extui %14 : i1 to i32
    %c0_i32_7 = arith.constant 0 : i32
    %16 = arith.cmpi ne, %15, %c0_i32_7 : i32
    scf.if %16 {
      %c0_8 = arith.constant 0 : index
      %17 = memref.load %arg4[%c0_8] : memref<1xi32, #tpu.memory_space<smem>>
      %c0_i32_9 = arith.constant 0 : i32
      %c0_i32_10 = arith.constant 0 : i32
      %c30_i32 = arith.constant 30 : i32
      %18 = arith.subi %c30_i32, %c0_i32_10 : i32
      %c1_i32 = arith.constant 1 : i32
      %19 = arith.shli %c1_i32, %18 : i32
      %20 = arith.ori %c0_i32_9, %19 : i32
      %c0_11 = arith.constant 0 : index
      %c0_12 = arith.constant 0 : index
      %21 = vector.load %arg8[%c0_11, %c0_12] : memref<16x128xi32, #tpu.memory_space<vmem>>, vector<16x128xi32>
      %22 = vector.broadcast %20 : i32 to vector<16x128xi32>
      %23 = arith.cmpi slt, %21, %22 : vector<16x128xi32>
      %c1_i32_13 = arith.constant 1 : i32
      %c0_i32_14 = arith.constant 0 : i32
      %24 = vector.broadcast %c1_i32_13 : i32 to vector<16x128xi32>
      %25 = vector.broadcast %c0_i32_14 : i32 to vector<16x128xi32>
      %26 = arith.select %23, %24, %25 : vector<16x128xi1>, vector<16x128xi32>
      %27 = vector.shape_cast %26 : vector<16x128xi32> to vector<2x8x128xi32>
      %cst_15 = arith.constant dense<0> : vector<8x128xi32>
      %28 = vector.multi_reduction <add>, %27, %cst_15 [0] : vector<2x8x128xi32> to vector<8x128xi32>
      %29 = vector.shape_cast %28 : vector<8x128xi32> to vector<1x8x128xi32>
      %cst_16 = arith.constant dense<0> : vector<1xi32>
      %30 = vector.multi_reduction <add>, %29, %cst_16 [1, 2] : vector<1x8x128xi32> to vector<1xi32>
      %31 = vector.shape_cast %30 : vector<1xi32> to vector<1x1x1xi32>
      %32 = vector.extract %31[0, 0, 0] : i32 from vector<1x1x1xi32>
      %33 = arith.cmpi slt, %32, %17 : i32
      %34 = arith.select %33, %20, %c0_i32_9 : i32
      %c1_i32_17 = arith.constant 1 : i32
      %c30_i32_18 = arith.constant 30 : i32
      %35 = arith.subi %c30_i32_18, %c1_i32_17 : i32
      %c1_i32_19 = arith.constant 1 : i32
      %36 = arith.shli %c1_i32_19, %35 : i32
      %37 = arith.ori %34, %36 : i32
      %c0_20 = arith.constant 0 : index
      %c0_21 = arith.constant 0 : index
      %38 = vector.load %arg8[%c0_20, %c0_21] : memref<16x128xi32, #tpu.memory_space<vmem>>, vector<16x128xi32>
      %39 = vector.broadcast %37 : i32 to vector<16x128xi32>
      %40 = arith.cmpi slt, %38, %39 : vector<16x128xi32>
      %c1_i32_22 = arith.constant 1 : i32
      %c0_i32_23 = arith.constant 0 : i32
      %41 = vector.broadcast %c1_i32_22 : i32 to vector<16x128xi32>
      %42 = vector.broadcast %c0_i32_23 : i32 to vector<16x128xi32>
      %43 = arith.select %40, %41, %42 : vector<16x128xi1>, vector<16x128xi32>
      %44 = vector.shape_cast %43 : vector<16x128xi32> to vector<2x8x128xi32>
      %cst_24 = arith.constant dense<0> : vector<8x128xi32>
      %45 = vector.multi_reduction <add>, %44, %cst_24 [0] : vector<2x8x128xi32> to vector<8x128xi32>
      %46 = vector.shape_cast %45 : vector<8x128xi32> to vector<1x8x128xi32>
      %cst_25 = arith.constant dense<0> : vector<1xi32>
      %47 = vector.multi_reduction <add>, %46, %cst_25 [1, 2] : vector<1x8x128xi32> to vector<1xi32>
      %48 = vector.shape_cast %47 : vector<1xi32> to vector<1x1x1xi32>
      %49 = vector.extract %48[0, 0, 0] : i32 from vector<1x1x1xi32>
      %50 = arith.cmpi slt, %49, %17 : i32
      %51 = arith.select %50, %37, %34 : i32
      %c2_i32 = arith.constant 2 : i32
      %c30_i32_26 = arith.constant 30 : i32
      %52 = arith.subi %c30_i32_26, %c2_i32 : i32
      %c1_i32_27 = arith.constant 1 : i32
      %53 = arith.shli %c1_i32_27, %52 : i32
      %54 = arith.ori %51, %53 : i32
      %c0_28 = arith.constant 0 : index
      %c0_29 = arith.constant 0 : index
      %55 = vector.load %arg8[%c0_28, %c0_29] : memref<16x128xi32, #tpu.memory_space<vmem>>, vector<16x128xi32>
      %56 = vector.broadcast %54 : i32 to vector<16x128xi32>
      %57 = arith.cmpi slt, %55, %56 : vector<16x128xi32>
      %c1_i32_30 = arith.constant 1 : i32
      %c0_i32_31 = arith.constant 0 : i32
      %58 = vector.broadcast %c1_i32_30 : i32 to vector<16x128xi32>
      %59 = vector.broadcast %c0_i32_31 : i32 to vector<16x128xi32>
      %60 = arith.select %57, %58, %59 : vector<16x128xi1>, vector<16x128xi32>
      %61 = vector.shape_cast %60 : vector<16x128xi32> to vector<2x8x128xi32>
      %cst_32 = arith.constant dense<0> : vector<8x128xi32>
      %62 = vector.multi_reduction <add>, %61, %cst_32 [0] : vector<2x8x128xi32> to vector<8x128xi32>
      %63 = vector.shape_cast %62 : vector<8x128xi32> to vector<1x8x128xi32>
      %cst_33 = arith.constant dense<0> : vector<1xi32>
      %64 = vector.multi_reduction <add>, %63, %cst_33 [1, 2] : vector<1x8x128xi32> to vector<1xi32>
      %65 = vector.shape_cast %64 : vector<1xi32> to vector<1x1x1xi32>
      %66 = vector.extract %65[0, 0, 0] : i32 from vector<1x1x1xi32>
      %67 = arith.cmpi slt, %66, %17 : i32
      %68 = arith.select %67, %54, %51 : i32
      %c3_i32 = arith.constant 3 : i32
      %c30_i32_34 = arith.constant 30 : i32
      %69 = arith.subi %c30_i32_34, %c3_i32 : i32
      %c1_i32_35 = arith.constant 1 : i32
      %70 = arith.shli %c1_i32_35, %69 : i32
      %71 = arith.ori %68, %70 : i32
      %c0_36 = arith.constant 0 : index
      %c0_37 = arith.constant 0 : index
      %72 = vector.load %arg8[%c0_36, %c0_37] : memref<16x128xi32, #tpu.memory_space<vmem>>, vector<16x128xi32>
      %73 = vector.broadcast %71 : i32 to vector<16x128xi32>
      %74 = arith.cmpi slt, %72, %73 : vector<16x128xi32>
      %c1_i32_38 = arith.constant 1 : i32
      %c0_i32_39 = arith.constant 0 : i32
      %75 = vector.broadcast %c1_i32_38 : i32 to vector<16x128xi32>
      %76 = vector.broadcast %c0_i32_39 : i32 to vector<16x128xi32>
      %77 = arith.select %74, %75, %76 : vector<16x128xi1>, vector<16x128xi32>
      %78 = vector.shape_cast %77 : vector<16x128xi32> to vector<2x8x128xi32>
      %cst_40 = arith.constant dense<0> : vector<8x128xi32>
      %79 = vector.multi_reduction <add>, %78, %cst_40 [0] : vector<2x8x128xi32> to vector<8x128xi32>
      %80 = vector.shape_cast %79 : vector<8x128xi32> to vector<1x8x128xi32>
      %cst_41 = arith.constant dense<0> : vector<1xi32>
      %81 = vector.multi_reduction <add>, %80, %cst_41 [1, 2] : vector<1x8x128xi32> to vector<1xi32>
      %82 = vector.shape_cast %81 : vector<1xi32> to vector<1x1x1xi32>
      %83 = vector.extract %82[0, 0, 0] : i32 from vector<1x1x1xi32>
      %84 = arith.cmpi slt, %83, %17 : i32
      %85 = arith.select %84, %71, %68 : i32
      %c4_i32 = arith.constant 4 : i32
      %c30_i32_42 = arith.constant 30 : i32
      %86 = arith.subi %c30_i32_42, %c4_i32 : i32
      %c1_i32_43 = arith.constant 1 : i32
      %87 = arith.shli %c1_i32_43, %86 : i32
      %88 = arith.ori %85, %87 : i32
      %c0_44 = arith.constant 0 : index
      %c0_45 = arith.constant 0 : index
      %89 = vector.load %arg8[%c0_44, %c0_45] : memref<16x128xi32, #tpu.memory_space<vmem>>, vector<16x128xi32>
      %90 = vector.broadcast %88 : i32 to vector<16x128xi32>
      %91 = arith.cmpi slt, %89, %90 : vector<16x128xi32>
      %c1_i32_46 = arith.constant 1 : i32
      %c0_i32_47 = arith.constant 0 : i32
      %92 = vector.broadcast %c1_i32_46 : i32 to vector<16x128xi32>
      %93 = vector.broadcast %c0_i32_47 : i32 to vector<16x128xi32>
      %94 = arith.select %91, %92, %93 : vector<16x128xi1>, vector<16x128xi32>
      %95 = vector.shape_cast %94 : vector<16x128xi32> to vector<2x8x128xi32>
      %cst_48 = arith.constant dense<0> : vector<8x128xi32>
      %96 = vector.multi_reduction <add>, %95, %cst_48 [0] : vector<2x8x128xi32> to vector<8x128xi32>
      %97 = vector.shape_cast %96 : vector<8x128xi32> to vector<1x8x128xi32>
      %cst_49 = arith.constant dense<0> : vector<1xi32>
      %98 = vector.multi_reduction <add>, %97, %cst_49 [1, 2] : vector<1x8x128xi32> to vector<1xi32>
      %99 = vector.shape_cast %98 : vector<1xi32> to vector<1x1x1xi32>
      %100 = vector.extract %99[0, 0, 0] : i32 from vector<1x1x1xi32>
      %101 = arith.cmpi slt, %100, %17 : i32
      %102 = arith.select %101, %88, %85 : i32
      %c5_i32 = arith.constant 5 : i32
      %c30_i32_50 = arith.constant 30 : i32
      %103 = arith.subi %c30_i32_50, %c5_i32 : i32
      %c1_i32_51 = arith.constant 1 : i32
      %104 = arith.shli %c1_i32_51, %103 : i32
      %105 = arith.ori %102, %104 : i32
      %c0_52 = arith.constant 0 : index
      %c0_53 = arith.constant 0 : index
      %106 = vector.load %arg8[%c0_52, %c0_53] : memref<16x128xi32, #tpu.memory_space<vmem>>, vector<16x128xi32>
      %107 = vector.broadcast %105 : i32 to vector<16x128xi32>
      %108 = arith.cmpi slt, %106, %107 : vector<16x128xi32>
      %c1_i32_54 = arith.constant 1 : i32
      %c0_i32_55 = arith.constant 0 : i32
      %109 = vector.broadcast %c1_i32_54 : i32 to vector<16x128xi32>
      %110 = vector.broadcast %c0_i32_55 : i32 to vector<16x128xi32>
      %111 = arith.select %108, %109, %110 : vector<16x128xi1>, vector<16x128xi32>
      %112 = vector.shape_cast %111 : vector<16x128xi32> to vector<2x8x128xi32>
      %cst_56 = arith.constant dense<0> : vector<8x128xi32>
      %113 = vector.multi_reduction <add>, %112, %cst_56 [0] : vector<2x8x128xi32> to vector<8x128xi32>
      %114 = vector.shape_cast %113 : vector<8x128xi32> to vector<1x8x128xi32>
      %cst_57 = arith.constant dense<0> : vector<1xi32>
      %115 = vector.multi_reduction <add>, %114, %cst_57 [1, 2] : vector<1x8x128xi32> to vector<1xi32>
      %116 = vector.shape_cast %115 : vector<1xi32> to vector<1x1x1xi32>
      %117 = vector.extract %116[0, 0, 0] : i32 from vector<1x1x1xi32>
      %118 = arith.cmpi slt, %117, %17 : i32
      %119 = arith.select %118, %105, %102 : i32
      %c6_i32 = arith.constant 6 : i32
      %c30_i32_58 = arith.constant 30 : i32
      %120 = arith.subi %c30_i32_58, %c6_i32 : i32
      %c1_i32_59 = arith.constant 1 : i32
      %121 = arith.shli %c1_i32_59, %120 : i32
      %122 = arith.ori %119, %121 : i32
      %c0_60 = arith.constant 0 : index
      %c0_61 = arith.constant 0 : index
      %123 = vector.load %arg8[%c0_60, %c0_61] : memref<16x128xi32, #tpu.memory_space<vmem>>, vector<16x128xi32>
      %124 = vector.broadcast %122 : i32 to vector<16x128xi32>
      %125 = arith.cmpi slt, %123, %124 : vector<16x128xi32>
      %c1_i32_62 = arith.constant 1 : i32
      %c0_i32_63 = arith.constant 0 : i32
      %126 = vector.broadcast %c1_i32_62 : i32 to vector<16x128xi32>
      %127 = vector.broadcast %c0_i32_63 : i32 to vector<16x128xi32>
      %128 = arith.select %125, %126, %127 : vector<16x128xi1>, vector<16x128xi32>
      %129 = vector.shape_cast %128 : vector<16x128xi32> to vector<2x8x128xi32>
      %cst_64 = arith.constant dense<0> : vector<8x128xi32>
      %130 = vector.multi_reduction <add>, %129, %cst_64 [0] : vector<2x8x128xi32> to vector<8x128xi32>
      %131 = vector.shape_cast %130 : vector<8x128xi32> to vector<1x8x128xi32>
      %cst_65 = arith.constant dense<0> : vector<1xi32>
      %132 = vector.multi_reduction <add>, %131, %cst_65 [1, 2] : vector<1x8x128xi32> to vector<1xi32>
      %133 = vector.shape_cast %132 : vector<1xi32> to vector<1x1x1xi32>
      %134 = vector.extract %133[0, 0, 0] : i32 from vector<1x1x1xi32>
      %135 = arith.cmpi slt, %134, %17 : i32
      %136 = arith.select %135, %122, %119 : i32
      %c7_i32 = arith.constant 7 : i32
      %c30_i32_66 = arith.constant 30 : i32
      %137 = arith.subi %c30_i32_66, %c7_i32 : i32
      %c1_i32_67 = arith.constant 1 : i32
      %138 = arith.shli %c1_i32_67, %137 : i32
      %139 = arith.ori %136, %138 : i32
      %c0_68 = arith.constant 0 : index
      %c0_69 = arith.constant 0 : index
      %140 = vector.load %arg8[%c0_68, %c0_69] : memref<16x128xi32, #tpu.memory_space<vmem>>, vector<16x128xi32>
      %141 = vector.broadcast %139 : i32 to vector<16x128xi32>
      %142 = arith.cmpi slt, %140, %141 : vector<16x128xi32>
      %c1_i32_70 = arith.constant 1 : i32
      %c0_i32_71 = arith.constant 0 : i32
      %143 = vector.broadcast %c1_i32_70 : i32 to vector<16x128xi32>
      %144 = vector.broadcast %c0_i32_71 : i32 to vector<16x128xi32>
      %145 = arith.select %142, %143, %144 : vector<16x128xi1>, vector<16x128xi32>
      %146 = vector.shape_cast %145 : vector<16x128xi32> to vector<2x8x128xi32>
      %cst_72 = arith.constant dense<0> : vector<8x128xi32>
      %147 = vector.multi_reduction <add>, %146, %cst_72 [0] : vector<2x8x128xi32> to vector<8x128xi32>
      %148 = vector.shape_cast %147 : vector<8x128xi32> to vector<1x8x128xi32>
      %cst_73 = arith.constant dense<0> : vector<1xi32>
      %149 = vector.multi_reduction <add>, %148, %cst_73 [1, 2] : vector<1x8x128xi32> to vector<1xi32>
      %150 = vector.shape_cast %149 : vector<1xi32> to vector<1x1x1xi32>
      %151 = vector.extract %150[0, 0, 0] : i32 from vector<1x1x1xi32>
      %152 = arith.cmpi slt, %151, %17 : i32
      %153 = arith.select %152, %139, %136 : i32
      %c8_i32 = arith.constant 8 : i32
      %c30_i32_74 = arith.constant 30 : i32
      %154 = arith.subi %c30_i32_74, %c8_i32 : i32
      %c1_i32_75 = arith.constant 1 : i32
      %155 = arith.shli %c1_i32_75, %154 : i32
      %156 = arith.ori %153, %155 : i32
      %c0_76 = arith.constant 0 : index
      %c0_77 = arith.constant 0 : index
      %157 = vector.load %arg8[%c0_76, %c0_77] : memref<16x128xi32, #tpu.memory_space<vmem>>, vector<16x128xi32>
      %158 = vector.broadcast %156 : i32 to vector<16x128xi32>
      %159 = arith.cmpi slt, %157, %158 : vector<16x128xi32>
      %c1_i32_78 = arith.constant 1 : i32
      %c0_i32_79 = arith.constant 0 : i32
      %160 = vector.broadcast %c1_i32_78 : i32 to vector<16x128xi32>
      %161 = vector.broadcast %c0_i32_79 : i32 to vector<16x128xi32>
      %162 = arith.select %159, %160, %161 : vector<16x128xi1>, vector<16x128xi32>
      %163 = vector.shape_cast %162 : vector<16x128xi32> to vector<2x8x128xi32>
      %cst_80 = arith.constant dense<0> : vector<8x128xi32>
      %164 = vector.multi_reduction <add>, %163, %cst_80 [0] : vector<2x8x128xi32> to vector<8x128xi32>
      %165 = vector.shape_cast %164 : vector<8x128xi32> to vector<1x8x128xi32>
      %cst_81 = arith.constant dense<0> : vector<1xi32>
      %166 = vector.multi_reduction <add>, %165, %cst_81 [1, 2] : vector<1x8x128xi32> to vector<1xi32>
      %167 = vector.shape_cast %166 : vector<1xi32> to vector<1x1x1xi32>
      %168 = vector.extract %167[0, 0, 0] : i32 from vector<1x1x1xi32>
      %169 = arith.cmpi slt, %168, %17 : i32
      %170 = arith.select %169, %156, %153 : i32
      %c9_i32 = arith.constant 9 : i32
      %c30_i32_82 = arith.constant 30 : i32
      %171 = arith.subi %c30_i32_82, %c9_i32 : i32
      %c1_i32_83 = arith.constant 1 : i32
      %172 = arith.shli %c1_i32_83, %171 : i32
      %173 = arith.ori %170, %172 : i32
      %c0_84 = arith.constant 0 : index
      %c0_85 = arith.constant 0 : index
      %174 = vector.load %arg8[%c0_84, %c0_85] : memref<16x128xi32, #tpu.memory_space<vmem>>, vector<16x128xi32>
      %175 = vector.broadcast %173 : i32 to vector<16x128xi32>
      %176 = arith.cmpi slt, %174, %175 : vector<16x128xi32>
      %c1_i32_86 = arith.constant 1 : i32
      %c0_i32_87 = arith.constant 0 : i32
      %177 = vector.broadcast %c1_i32_86 : i32 to vector<16x128xi32>
      %178 = vector.broadcast %c0_i32_87 : i32 to vector<16x128xi32>
      %179 = arith.select %176, %177, %178 : vector<16x128xi1>, vector<16x128xi32>
      %180 = vector.shape_cast %179 : vector<16x128xi32> to vector<2x8x128xi32>
      %cst_88 = arith.constant dense<0> : vector<8x128xi32>
      %181 = vector.multi_reduction <add>, %180, %cst_88 [0] : vector<2x8x128xi32> to vector<8x128xi32>
      %182 = vector.shape_cast %181 : vector<8x128xi32> to vector<1x8x128xi32>
      %cst_89 = arith.constant dense<0> : vector<1xi32>
      %183 = vector.multi_reduction <add>, %182, %cst_89 [1, 2] : vector<1x8x128xi32> to vector<1xi32>
      %184 = vector.shape_cast %183 : vector<1xi32> to vector<1x1x1xi32>
      %185 = vector.extract %184[0, 0, 0] : i32 from vector<1x1x1xi32>
      %186 = arith.cmpi slt, %185, %17 : i32
      %187 = arith.select %186, %173, %170 : i32
      %c10_i32 = arith.constant 10 : i32
      %c30_i32_90 = arith.constant 30 : i32
      %188 = arith.subi %c30_i32_90, %c10_i32 : i32
      %c1_i32_91 = arith.constant 1 : i32
      %189 = arith.shli %c1_i32_91, %188 : i32
      %190 = arith.ori %187, %189 : i32
      %c0_92 = arith.constant 0 : index
      %c0_93 = arith.constant 0 : index
      %191 = vector.load %arg8[%c0_92, %c0_93] : memref<16x128xi32, #tpu.memory_space<vmem>>, vector<16x128xi32>
      %192 = vector.broadcast %190 : i32 to vector<16x128xi32>
      %193 = arith.cmpi slt, %191, %192 : vector<16x128xi32>
      %c1_i32_94 = arith.constant 1 : i32
      %c0_i32_95 = arith.constant 0 : i32
      %194 = vector.broadcast %c1_i32_94 : i32 to vector<16x128xi32>
      %195 = vector.broadcast %c0_i32_95 : i32 to vector<16x128xi32>
      %196 = arith.select %193, %194, %195 : vector<16x128xi1>, vector<16x128xi32>
      %197 = vector.shape_cast %196 : vector<16x128xi32> to vector<2x8x128xi32>
      %cst_96 = arith.constant dense<0> : vector<8x128xi32>
      %198 = vector.multi_reduction <add>, %197, %cst_96 [0] : vector<2x8x128xi32> to vector<8x128xi32>
      %199 = vector.shape_cast %198 : vector<8x128xi32> to vector<1x8x128xi32>
      %cst_97 = arith.constant dense<0> : vector<1xi32>
      %200 = vector.multi_reduction <add>, %199, %cst_97 [1, 2] : vector<1x8x128xi32> to vector<1xi32>
      %201 = vector.shape_cast %200 : vector<1xi32> to vector<1x1x1xi32>
      %202 = vector.extract %201[0, 0, 0] : i32 from vector<1x1x1xi32>
      %203 = arith.cmpi slt, %202, %17 : i32
      %204 = arith.select %203, %190, %187 : i32
      %c11_i32 = arith.constant 11 : i32
      %c30_i32_98 = arith.constant 30 : i32
      %205 = arith.subi %c30_i32_98, %c11_i32 : i32
      %c1_i32_99 = arith.constant 1 : i32
      %206 = arith.shli %c1_i32_99, %205 : i32
      %207 = arith.ori %204, %206 : i32
      %c0_100 = arith.constant 0 : index
      %c0_101 = arith.constant 0 : index
      %208 = vector.load %arg8[%c0_100, %c0_101] : memref<16x128xi32, #tpu.memory_space<vmem>>, vector<16x128xi32>
      %209 = vector.broadcast %207 : i32 to vector<16x128xi32>
      %210 = arith.cmpi slt, %208, %209 : vector<16x128xi32>
      %c1_i32_102 = arith.constant 1 : i32
      %c0_i32_103 = arith.constant 0 : i32
      %211 = vector.broadcast %c1_i32_102 : i32 to vector<16x128xi32>
      %212 = vector.broadcast %c0_i32_103 : i32 to vector<16x128xi32>
      %213 = arith.select %210, %211, %212 : vector<16x128xi1>, vector<16x128xi32>
      %214 = vector.shape_cast %213 : vector<16x128xi32> to vector<2x8x128xi32>
      %cst_104 = arith.constant dense<0> : vector<8x128xi32>
      %215 = vector.multi_reduction <add>, %214, %cst_104 [0] : vector<2x8x128xi32> to vector<8x128xi32>
      %216 = vector.shape_cast %215 : vector<8x128xi32> to vector<1x8x128xi32>
      %cst_105 = arith.constant dense<0> : vector<1xi32>
      %217 = vector.multi_reduction <add>, %216, %cst_105 [1, 2] : vector<1x8x128xi32> to vector<1xi32>
      %218 = vector.shape_cast %217 : vector<1xi32> to vector<1x1x1xi32>
      %219 = vector.extract %218[0, 0, 0] : i32 from vector<1x1x1xi32>
      %220 = arith.cmpi slt, %219, %17 : i32
      %221 = arith.select %220, %207, %204 : i32
      %c12_i32 = arith.constant 12 : i32
      %c30_i32_106 = arith.constant 30 : i32
      %222 = arith.subi %c30_i32_106, %c12_i32 : i32
      %c1_i32_107 = arith.constant 1 : i32
      %223 = arith.shli %c1_i32_107, %222 : i32
      %224 = arith.ori %221, %223 : i32
      %c0_108 = arith.constant 0 : index
      %c0_109 = arith.constant 0 : index
      %225 = vector.load %arg8[%c0_108, %c0_109] : memref<16x128xi32, #tpu.memory_space<vmem>>, vector<16x128xi32>
      %226 = vector.broadcast %224 : i32 to vector<16x128xi32>
      %227 = arith.cmpi slt, %225, %226 : vector<16x128xi32>
      %c1_i32_110 = arith.constant 1 : i32
      %c0_i32_111 = arith.constant 0 : i32
      %228 = vector.broadcast %c1_i32_110 : i32 to vector<16x128xi32>
      %229 = vector.broadcast %c0_i32_111 : i32 to vector<16x128xi32>
      %230 = arith.select %227, %228, %229 : vector<16x128xi1>, vector<16x128xi32>
      %231 = vector.shape_cast %230 : vector<16x128xi32> to vector<2x8x128xi32>
      %cst_112 = arith.constant dense<0> : vector<8x128xi32>
      %232 = vector.multi_reduction <add>, %231, %cst_112 [0] : vector<2x8x128xi32> to vector<8x128xi32>
      %233 = vector.shape_cast %232 : vector<8x128xi32> to vector<1x8x128xi32>
      %cst_113 = arith.constant dense<0> : vector<1xi32>
      %234 = vector.multi_reduction <add>, %233, %cst_113 [1, 2] : vector<1x8x128xi32> to vector<1xi32>
      %235 = vector.shape_cast %234 : vector<1xi32> to vector<1x1x1xi32>
      %236 = vector.extract %235[0, 0, 0] : i32 from vector<1x1x1xi32>
      %237 = arith.cmpi slt, %236, %17 : i32
      %238 = arith.select %237, %224, %221 : i32
      %c13_i32 = arith.constant 13 : i32
      %c30_i32_114 = arith.constant 30 : i32
      %239 = arith.subi %c30_i32_114, %c13_i32 : i32
      %c1_i32_115 = arith.constant 1 : i32
      %240 = arith.shli %c1_i32_115, %239 : i32
      %241 = arith.ori %238, %240 : i32
      %c0_116 = arith.constant 0 : index
      %c0_117 = arith.constant 0 : index
      %242 = vector.load %arg8[%c0_116, %c0_117] : memref<16x128xi32, #tpu.memory_space<vmem>>, vector<16x128xi32>
      %243 = vector.broadcast %241 : i32 to vector<16x128xi32>
      %244 = arith.cmpi slt, %242, %243 : vector<16x128xi32>
      %c1_i32_118 = arith.constant 1 : i32
      %c0_i32_119 = arith.constant 0 : i32
      %245 = vector.broadcast %c1_i32_118 : i32 to vector<16x128xi32>
      %246 = vector.broadcast %c0_i32_119 : i32 to vector<16x128xi32>
      %247 = arith.select %244, %245, %246 : vector<16x128xi1>, vector<16x128xi32>
      %248 = vector.shape_cast %247 : vector<16x128xi32> to vector<2x8x128xi32>
      %cst_120 = arith.constant dense<0> : vector<8x128xi32>
      %249 = vector.multi_reduction <add>, %248, %cst_120 [0] : vector<2x8x128xi32> to vector<8x128xi32>
      %250 = vector.shape_cast %249 : vector<8x128xi32> to vector<1x8x128xi32>
      %cst_121 = arith.constant dense<0> : vector<1xi32>
      %251 = vector.multi_reduction <add>, %250, %cst_121 [1, 2] : vector<1x8x128xi32> to vector<1xi32>
      %252 = vector.shape_cast %251 : vector<1xi32> to vector<1x1x1xi32>
      %253 = vector.extract %252[0, 0, 0] : i32 from vector<1x1x1xi32>
      %254 = arith.cmpi slt, %253, %17 : i32
      %255 = arith.select %254, %241, %238 : i32
      %c14_i32 = arith.constant 14 : i32
      %c30_i32_122 = arith.constant 30 : i32
      %256 = arith.subi %c30_i32_122, %c14_i32 : i32
      %c1_i32_123 = arith.constant 1 : i32
      %257 = arith.shli %c1_i32_123, %256 : i32
      %258 = arith.ori %255, %257 : i32
      %c0_124 = arith.constant 0 : index
      %c0_125 = arith.constant 0 : index
      %259 = vector.load %arg8[%c0_124, %c0_125] : memref<16x128xi32, #tpu.memory_space<vmem>>, vector<16x128xi32>
      %260 = vector.broadcast %258 : i32 to vector<16x128xi32>
      %261 = arith.cmpi slt, %259, %260 : vector<16x128xi32>
      %c1_i32_126 = arith.constant 1 : i32
      %c0_i32_127 = arith.constant 0 : i32
      %262 = vector.broadcast %c1_i32_126 : i32 to vector<16x128xi32>
      %263 = vector.broadcast %c0_i32_127 : i32 to vector<16x128xi32>
      %264 = arith.select %261, %262, %263 : vector<16x128xi1>, vector<16x128xi32>
      %265 = vector.shape_cast %264 : vector<16x128xi32> to vector<2x8x128xi32>
      %cst_128 = arith.constant dense<0> : vector<8x128xi32>
      %266 = vector.multi_reduction <add>, %265, %cst_128 [0] : vector<2x8x128xi32> to vector<8x128xi32>
      %267 = vector.shape_cast %266 : vector<8x128xi32> to vector<1x8x128xi32>
      %cst_129 = arith.constant dense<0> : vector<1xi32>
      %268 = vector.multi_reduction <add>, %267, %cst_129 [1, 2] : vector<1x8x128xi32> to vector<1xi32>
      %269 = vector.shape_cast %268 : vector<1xi32> to vector<1x1x1xi32>
      %270 = vector.extract %269[0, 0, 0] : i32 from vector<1x1x1xi32>
      %271 = arith.cmpi slt, %270, %17 : i32
      %272 = arith.select %271, %258, %255 : i32
      %c15_i32 = arith.constant 15 : i32
      %c30_i32_130 = arith.constant 30 : i32
      %273 = arith.subi %c30_i32_130, %c15_i32 : i32
      %c1_i32_131 = arith.constant 1 : i32
      %274 = arith.shli %c1_i32_131, %273 : i32
      %275 = arith.ori %272, %274 : i32
      %c0_132 = arith.constant 0 : index
      %c0_133 = arith.constant 0 : index
      %276 = vector.load %arg8[%c0_132, %c0_133] : memref<16x128xi32, #tpu.memory_space<vmem>>, vector<16x128xi32>
      %277 = vector.broadcast %275 : i32 to vector<16x128xi32>
      %278 = arith.cmpi slt, %276, %277 : vector<16x128xi32>
      %c1_i32_134 = arith.constant 1 : i32
      %c0_i32_135 = arith.constant 0 : i32
      %279 = vector.broadcast %c1_i32_134 : i32 to vector<16x128xi32>
      %280 = vector.broadcast %c0_i32_135 : i32 to vector<16x128xi32>
      %281 = arith.select %278, %279, %280 : vector<16x128xi1>, vector<16x128xi32>
      %282 = vector.shape_cast %281 : vector<16x128xi32> to vector<2x8x128xi32>
      %cst_136 = arith.constant dense<0> : vector<8x128xi32>
      %283 = vector.multi_reduction <add>, %282, %cst_136 [0] : vector<2x8x128xi32> to vector<8x128xi32>
      %284 = vector.shape_cast %283 : vector<8x128xi32> to vector<1x8x128xi32>
      %cst_137 = arith.constant dense<0> : vector<1xi32>
      %285 = vector.multi_reduction <add>, %284, %cst_137 [1, 2] : vector<1x8x128xi32> to vector<1xi32>
      %286 = vector.shape_cast %285 : vector<1xi32> to vector<1x1x1xi32>
      %287 = vector.extract %286[0, 0, 0] : i32 from vector<1x1x1xi32>
      %288 = arith.cmpi slt, %287, %17 : i32
      %289 = arith.select %288, %275, %272 : i32
      %c16_i32 = arith.constant 16 : i32
      %c30_i32_138 = arith.constant 30 : i32
      %290 = arith.subi %c30_i32_138, %c16_i32 : i32
      %c1_i32_139 = arith.constant 1 : i32
      %291 = arith.shli %c1_i32_139, %290 : i32
      %292 = arith.ori %289, %291 : i32
      %c0_140 = arith.constant 0 : index
      %c0_141 = arith.constant 0 : index
      %293 = vector.load %arg8[%c0_140, %c0_141] : memref<16x128xi32, #tpu.memory_space<vmem>>, vector<16x128xi32>
      %294 = vector.broadcast %292 : i32 to vector<16x128xi32>
      %295 = arith.cmpi slt, %293, %294 : vector<16x128xi32>
      %c1_i32_142 = arith.constant 1 : i32
      %c0_i32_143 = arith.constant 0 : i32
      %296 = vector.broadcast %c1_i32_142 : i32 to vector<16x128xi32>
      %297 = vector.broadcast %c0_i32_143 : i32 to vector<16x128xi32>
      %298 = arith.select %295, %296, %297 : vector<16x128xi1>, vector<16x128xi32>
      %299 = vector.shape_cast %298 : vector<16x128xi32> to vector<2x8x128xi32>
      %cst_144 = arith.constant dense<0> : vector<8x128xi32>
      %300 = vector.multi_reduction <add>, %299, %cst_144 [0] : vector<2x8x128xi32> to vector<8x128xi32>
      %301 = vector.shape_cast %300 : vector<8x128xi32> to vector<1x8x128xi32>
      %cst_145 = arith.constant dense<0> : vector<1xi32>
      %302 = vector.multi_reduction <add>, %301, %cst_145 [1, 2] : vector<1x8x128xi32> to vector<1xi32>
      %303 = vector.shape_cast %302 : vector<1xi32> to vector<1x1x1xi32>
      %304 = vector.extract %303[0, 0, 0] : i32 from vector<1x1x1xi32>
      %305 = arith.cmpi slt, %304, %17 : i32
      %306 = arith.select %305, %292, %289 : i32
      %c17_i32 = arith.constant 17 : i32
      %c30_i32_146 = arith.constant 30 : i32
      %307 = arith.subi %c30_i32_146, %c17_i32 : i32
      %c1_i32_147 = arith.constant 1 : i32
      %308 = arith.shli %c1_i32_147, %307 : i32
      %309 = arith.ori %306, %308 : i32
      %c0_148 = arith.constant 0 : index
      %c0_149 = arith.constant 0 : index
      %310 = vector.load %arg8[%c0_148, %c0_149] : memref<16x128xi32, #tpu.memory_space<vmem>>, vector<16x128xi32>
      %311 = vector.broadcast %309 : i32 to vector<16x128xi32>
      %312 = arith.cmpi slt, %310, %311 : vector<16x128xi32>
      %c1_i32_150 = arith.constant 1 : i32
      %c0_i32_151 = arith.constant 0 : i32
      %313 = vector.broadcast %c1_i32_150 : i32 to vector<16x128xi32>
      %314 = vector.broadcast %c0_i32_151 : i32 to vector<16x128xi32>
      %315 = arith.select %312, %313, %314 : vector<16x128xi1>, vector<16x128xi32>
      %316 = vector.shape_cast %315 : vector<16x128xi32> to vector<2x8x128xi32>
      %cst_152 = arith.constant dense<0> : vector<8x128xi32>
      %317 = vector.multi_reduction <add>, %316, %cst_152 [0] : vector<2x8x128xi32> to vector<8x128xi32>
      %318 = vector.shape_cast %317 : vector<8x128xi32> to vector<1x8x128xi32>
      %cst_153 = arith.constant dense<0> : vector<1xi32>
      %319 = vector.multi_reduction <add>, %318, %cst_153 [1, 2] : vector<1x8x128xi32> to vector<1xi32>
      %320 = vector.shape_cast %319 : vector<1xi32> to vector<1x1x1xi32>
      %321 = vector.extract %320[0, 0, 0] : i32 from vector<1x1x1xi32>
      %322 = arith.cmpi slt, %321, %17 : i32
      %323 = arith.select %322, %309, %306 : i32
      %c18_i32 = arith.constant 18 : i32
      %c30_i32_154 = arith.constant 30 : i32
      %324 = arith.subi %c30_i32_154, %c18_i32 : i32
      %c1_i32_155 = arith.constant 1 : i32
      %325 = arith.shli %c1_i32_155, %324 : i32
      %326 = arith.ori %323, %325 : i32
      %c0_156 = arith.constant 0 : index
      %c0_157 = arith.constant 0 : index
      %327 = vector.load %arg8[%c0_156, %c0_157] : memref<16x128xi32, #tpu.memory_space<vmem>>, vector<16x128xi32>
      %328 = vector.broadcast %326 : i32 to vector<16x128xi32>
      %329 = arith.cmpi slt, %327, %328 : vector<16x128xi32>
      %c1_i32_158 = arith.constant 1 : i32
      %c0_i32_159 = arith.constant 0 : i32
      %330 = vector.broadcast %c1_i32_158 : i32 to vector<16x128xi32>
      %331 = vector.broadcast %c0_i32_159 : i32 to vector<16x128xi32>
      %332 = arith.select %329, %330, %331 : vector<16x128xi1>, vector<16x128xi32>
      %333 = vector.shape_cast %332 : vector<16x128xi32> to vector<2x8x128xi32>
      %cst_160 = arith.constant dense<0> : vector<8x128xi32>
      %334 = vector.multi_reduction <add>, %333, %cst_160 [0] : vector<2x8x128xi32> to vector<8x128xi32>
      %335 = vector.shape_cast %334 : vector<8x128xi32> to vector<1x8x128xi32>
      %cst_161 = arith.constant dense<0> : vector<1xi32>
      %336 = vector.multi_reduction <add>, %335, %cst_161 [1, 2] : vector<1x8x128xi32> to vector<1xi32>
      %337 = vector.shape_cast %336 : vector<1xi32> to vector<1x1x1xi32>
      %338 = vector.extract %337[0, 0, 0] : i32 from vector<1x1x1xi32>
      %339 = arith.cmpi slt, %338, %17 : i32
      %340 = arith.select %339, %326, %323 : i32
      %c19_i32 = arith.constant 19 : i32
      %c30_i32_162 = arith.constant 30 : i32
      %341 = arith.subi %c30_i32_162, %c19_i32 : i32
      %c1_i32_163 = arith.constant 1 : i32
      %342 = arith.shli %c1_i32_163, %341 : i32
      %343 = arith.ori %340, %342 : i32
      %c0_164 = arith.constant 0 : index
      %c0_165 = arith.constant 0 : index
      %344 = vector.load %arg8[%c0_164, %c0_165] : memref<16x128xi32, #tpu.memory_space<vmem>>, vector<16x128xi32>
      %345 = vector.broadcast %343 : i32 to vector<16x128xi32>
      %346 = arith.cmpi slt, %344, %345 : vector<16x128xi32>
      %c1_i32_166 = arith.constant 1 : i32
      %c0_i32_167 = arith.constant 0 : i32
      %347 = vector.broadcast %c1_i32_166 : i32 to vector<16x128xi32>
      %348 = vector.broadcast %c0_i32_167 : i32 to vector<16x128xi32>
      %349 = arith.select %346, %347, %348 : vector<16x128xi1>, vector<16x128xi32>
      %350 = vector.shape_cast %349 : vector<16x128xi32> to vector<2x8x128xi32>
      %cst_168 = arith.constant dense<0> : vector<8x128xi32>
      %351 = vector.multi_reduction <add>, %350, %cst_168 [0] : vector<2x8x128xi32> to vector<8x128xi32>
      %352 = vector.shape_cast %351 : vector<8x128xi32> to vector<1x8x128xi32>
      %cst_169 = arith.constant dense<0> : vector<1xi32>
      %353 = vector.multi_reduction <add>, %352, %cst_169 [1, 2] : vector<1x8x128xi32> to vector<1xi32>
      %354 = vector.shape_cast %353 : vector<1xi32> to vector<1x1x1xi32>
      %355 = vector.extract %354[0, 0, 0] : i32 from vector<1x1x1xi32>
      %356 = arith.cmpi slt, %355, %17 : i32
      %357 = arith.select %356, %343, %340 : i32
      %c20_i32 = arith.constant 20 : i32
      %c30_i32_170 = arith.constant 30 : i32
      %358 = arith.subi %c30_i32_170, %c20_i32 : i32
      %c1_i32_171 = arith.constant 1 : i32
      %359 = arith.shli %c1_i32_171, %358 : i32
      %360 = arith.ori %357, %359 : i32
      %c0_172 = arith.constant 0 : index
      %c0_173 = arith.constant 0 : index
      %361 = vector.load %arg8[%c0_172, %c0_173] : memref<16x128xi32, #tpu.memory_space<vmem>>, vector<16x128xi32>
      %362 = vector.broadcast %360 : i32 to vector<16x128xi32>
      %363 = arith.cmpi slt, %361, %362 : vector<16x128xi32>
      %c1_i32_174 = arith.constant 1 : i32
      %c0_i32_175 = arith.constant 0 : i32
      %364 = vector.broadcast %c1_i32_174 : i32 to vector<16x128xi32>
      %365 = vector.broadcast %c0_i32_175 : i32 to vector<16x128xi32>
      %366 = arith.select %363, %364, %365 : vector<16x128xi1>, vector<16x128xi32>
      %367 = vector.shape_cast %366 : vector<16x128xi32> to vector<2x8x128xi32>
      %cst_176 = arith.constant dense<0> : vector<8x128xi32>
      %368 = vector.multi_reduction <add>, %367, %cst_176 [0] : vector<2x8x128xi32> to vector<8x128xi32>
      %369 = vector.shape_cast %368 : vector<8x128xi32> to vector<1x8x128xi32>
      %cst_177 = arith.constant dense<0> : vector<1xi32>
      %370 = vector.multi_reduction <add>, %369, %cst_177 [1, 2] : vector<1x8x128xi32> to vector<1xi32>
      %371 = vector.shape_cast %370 : vector<1xi32> to vector<1x1x1xi32>
      %372 = vector.extract %371[0, 0, 0] : i32 from vector<1x1x1xi32>
      %373 = arith.cmpi slt, %372, %17 : i32
      %374 = arith.select %373, %360, %357 : i32
      %c21_i32 = arith.constant 21 : i32
      %c30_i32_178 = arith.constant 30 : i32
      %375 = arith.subi %c30_i32_178, %c21_i32 : i32
      %c1_i32_179 = arith.constant 1 : i32
      %376 = arith.shli %c1_i32_179, %375 : i32
      %377 = arith.ori %374, %376 : i32
      %c0_180 = arith.constant 0 : index
      %c0_181 = arith.constant 0 : index
      %378 = vector.load %arg8[%c0_180, %c0_181] : memref<16x128xi32, #tpu.memory_space<vmem>>, vector<16x128xi32>
      %379 = vector.broadcast %377 : i32 to vector<16x128xi32>
      %380 = arith.cmpi slt, %378, %379 : vector<16x128xi32>
      %c1_i32_182 = arith.constant 1 : i32
      %c0_i32_183 = arith.constant 0 : i32
      %381 = vector.broadcast %c1_i32_182 : i32 to vector<16x128xi32>
      %382 = vector.broadcast %c0_i32_183 : i32 to vector<16x128xi32>
      %383 = arith.select %380, %381, %382 : vector<16x128xi1>, vector<16x128xi32>
      %384 = vector.shape_cast %383 : vector<16x128xi32> to vector<2x8x128xi32>
      %cst_184 = arith.constant dense<0> : vector<8x128xi32>
      %385 = vector.multi_reduction <add>, %384, %cst_184 [0] : vector<2x8x128xi32> to vector<8x128xi32>
      %386 = vector.shape_cast %385 : vector<8x128xi32> to vector<1x8x128xi32>
      %cst_185 = arith.constant dense<0> : vector<1xi32>
      %387 = vector.multi_reduction <add>, %386, %cst_185 [1, 2] : vector<1x8x128xi32> to vector<1xi32>
      %388 = vector.shape_cast %387 : vector<1xi32> to vector<1x1x1xi32>
      %389 = vector.extract %388[0, 0, 0] : i32 from vector<1x1x1xi32>
      %390 = arith.cmpi slt, %389, %17 : i32
      %391 = arith.select %390, %377, %374 : i32
      %c22_i32 = arith.constant 22 : i32
      %c30_i32_186 = arith.constant 30 : i32
      %392 = arith.subi %c30_i32_186, %c22_i32 : i32
      %c1_i32_187 = arith.constant 1 : i32
      %393 = arith.shli %c1_i32_187, %392 : i32
      %394 = arith.ori %391, %393 : i32
      %c0_188 = arith.constant 0 : index
      %c0_189 = arith.constant 0 : index
      %395 = vector.load %arg8[%c0_188, %c0_189] : memref<16x128xi32, #tpu.memory_space<vmem>>, vector<16x128xi32>
      %396 = vector.broadcast %394 : i32 to vector<16x128xi32>
      %397 = arith.cmpi slt, %395, %396 : vector<16x128xi32>
      %c1_i32_190 = arith.constant 1 : i32
      %c0_i32_191 = arith.constant 0 : i32
      %398 = vector.broadcast %c1_i32_190 : i32 to vector<16x128xi32>
      %399 = vector.broadcast %c0_i32_191 : i32 to vector<16x128xi32>
      %400 = arith.select %397, %398, %399 : vector<16x128xi1>, vector<16x128xi32>
      %401 = vector.shape_cast %400 : vector<16x128xi32> to vector<2x8x128xi32>
      %cst_192 = arith.constant dense<0> : vector<8x128xi32>
      %402 = vector.multi_reduction <add>, %401, %cst_192 [0] : vector<2x8x128xi32> to vector<8x128xi32>
      %403 = vector.shape_cast %402 : vector<8x128xi32> to vector<1x8x128xi32>
      %cst_193 = arith.constant dense<0> : vector<1xi32>
      %404 = vector.multi_reduction <add>, %403, %cst_193 [1, 2] : vector<1x8x128xi32> to vector<1xi32>
      %405 = vector.shape_cast %404 : vector<1xi32> to vector<1x1x1xi32>
      %406 = vector.extract %405[0, 0, 0] : i32 from vector<1x1x1xi32>
      %407 = arith.cmpi slt, %406, %17 : i32
      %408 = arith.select %407, %394, %391 : i32
      %c23_i32 = arith.constant 23 : i32
      %c30_i32_194 = arith.constant 30 : i32
      %409 = arith.subi %c30_i32_194, %c23_i32 : i32
      %c1_i32_195 = arith.constant 1 : i32
      %410 = arith.shli %c1_i32_195, %409 : i32
      %411 = arith.ori %408, %410 : i32
      %c0_196 = arith.constant 0 : index
      %c0_197 = arith.constant 0 : index
      %412 = vector.load %arg8[%c0_196, %c0_197] : memref<16x128xi32, #tpu.memory_space<vmem>>, vector<16x128xi32>
      %413 = vector.broadcast %411 : i32 to vector<16x128xi32>
      %414 = arith.cmpi slt, %412, %413 : vector<16x128xi32>
      %c1_i32_198 = arith.constant 1 : i32
      %c0_i32_199 = arith.constant 0 : i32
      %415 = vector.broadcast %c1_i32_198 : i32 to vector<16x128xi32>
      %416 = vector.broadcast %c0_i32_199 : i32 to vector<16x128xi32>
      %417 = arith.select %414, %415, %416 : vector<16x128xi1>, vector<16x128xi32>
      %418 = vector.shape_cast %417 : vector<16x128xi32> to vector<2x8x128xi32>
      %cst_200 = arith.constant dense<0> : vector<8x128xi32>
      %419 = vector.multi_reduction <add>, %418, %cst_200 [0] : vector<2x8x128xi32> to vector<8x128xi32>
      %420 = vector.shape_cast %419 : vector<8x128xi32> to vector<1x8x128xi32>
      %cst_201 = arith.constant dense<0> : vector<1xi32>
      %421 = vector.multi_reduction <add>, %420, %cst_201 [1, 2] : vector<1x8x128xi32> to vector<1xi32>
      %422 = vector.shape_cast %421 : vector<1xi32> to vector<1x1x1xi32>
      %423 = vector.extract %422[0, 0, 0] : i32 from vector<1x1x1xi32>
      %424 = arith.cmpi slt, %423, %17 : i32
      %425 = arith.select %424, %411, %408 : i32
      %c24_i32 = arith.constant 24 : i32
      %c30_i32_202 = arith.constant 30 : i32
      %426 = arith.subi %c30_i32_202, %c24_i32 : i32
      %c1_i32_203 = arith.constant 1 : i32
      %427 = arith.shli %c1_i32_203, %426 : i32
      %428 = arith.ori %425, %427 : i32
      %c0_204 = arith.constant 0 : index
      %c0_205 = arith.constant 0 : index
      %429 = vector.load %arg8[%c0_204, %c0_205] : memref<16x128xi32, #tpu.memory_space<vmem>>, vector<16x128xi32>
      %430 = vector.broadcast %428 : i32 to vector<16x128xi32>
      %431 = arith.cmpi slt, %429, %430 : vector<16x128xi32>
      %c1_i32_206 = arith.constant 1 : i32
      %c0_i32_207 = arith.constant 0 : i32
      %432 = vector.broadcast %c1_i32_206 : i32 to vector<16x128xi32>
      %433 = vector.broadcast %c0_i32_207 : i32 to vector<16x128xi32>
      %434 = arith.select %431, %432, %433 : vector<16x128xi1>, vector<16x128xi32>
      %435 = vector.shape_cast %434 : vector<16x128xi32> to vector<2x8x128xi32>
      %cst_208 = arith.constant dense<0> : vector<8x128xi32>
      %436 = vector.multi_reduction <add>, %435, %cst_208 [0] : vector<2x8x128xi32> to vector<8x128xi32>
      %437 = vector.shape_cast %436 : vector<8x128xi32> to vector<1x8x128xi32>
      %cst_209 = arith.constant dense<0> : vector<1xi32>
      %438 = vector.multi_reduction <add>, %437, %cst_209 [1, 2] : vector<1x8x128xi32> to vector<1xi32>
      %439 = vector.shape_cast %438 : vector<1xi32> to vector<1x1x1xi32>
      %440 = vector.extract %439[0, 0, 0] : i32 from vector<1x1x1xi32>
      %441 = arith.cmpi slt, %440, %17 : i32
      %442 = arith.select %441, %428, %425 : i32
      %c25_i32 = arith.constant 25 : i32
      %c30_i32_210 = arith.constant 30 : i32
      %443 = arith.subi %c30_i32_210, %c25_i32 : i32
      %c1_i32_211 = arith.constant 1 : i32
      %444 = arith.shli %c1_i32_211, %443 : i32
      %445 = arith.ori %442, %444 : i32
      %c0_212 = arith.constant 0 : index
      %c0_213 = arith.constant 0 : index
      %446 = vector.load %arg8[%c0_212, %c0_213] : memref<16x128xi32, #tpu.memory_space<vmem>>, vector<16x128xi32>
      %447 = vector.broadcast %445 : i32 to vector<16x128xi32>
      %448 = arith.cmpi slt, %446, %447 : vector<16x128xi32>
      %c1_i32_214 = arith.constant 1 : i32
      %c0_i32_215 = arith.constant 0 : i32
      %449 = vector.broadcast %c1_i32_214 : i32 to vector<16x128xi32>
      %450 = vector.broadcast %c0_i32_215 : i32 to vector<16x128xi32>
      %451 = arith.select %448, %449, %450 : vector<16x128xi1>, vector<16x128xi32>
      %452 = vector.shape_cast %451 : vector<16x128xi32> to vector<2x8x128xi32>
      %cst_216 = arith.constant dense<0> : vector<8x128xi32>
      %453 = vector.multi_reduction <add>, %452, %cst_216 [0] : vector<2x8x128xi32> to vector<8x128xi32>
      %454 = vector.shape_cast %453 : vector<8x128xi32> to vector<1x8x128xi32>
      %cst_217 = arith.constant dense<0> : vector<1xi32>
      %455 = vector.multi_reduction <add>, %454, %cst_217 [1, 2] : vector<1x8x128xi32> to vector<1xi32>
      %456 = vector.shape_cast %455 : vector<1xi32> to vector<1x1x1xi32>
      %457 = vector.extract %456[0, 0, 0] : i32 from vector<1x1x1xi32>
      %458 = arith.cmpi slt, %457, %17 : i32
      %459 = arith.select %458, %445, %442 : i32
      %c26_i32 = arith.constant 26 : i32
      %c30_i32_218 = arith.constant 30 : i32
      %460 = arith.subi %c30_i32_218, %c26_i32 : i32
      %c1_i32_219 = arith.constant 1 : i32
      %461 = arith.shli %c1_i32_219, %460 : i32
      %462 = arith.ori %459, %461 : i32
      %c0_220 = arith.constant 0 : index
      %c0_221 = arith.constant 0 : index
      %463 = vector.load %arg8[%c0_220, %c0_221] : memref<16x128xi32, #tpu.memory_space<vmem>>, vector<16x128xi32>
      %464 = vector.broadcast %462 : i32 to vector<16x128xi32>
      %465 = arith.cmpi slt, %463, %464 : vector<16x128xi32>
      %c1_i32_222 = arith.constant 1 : i32
      %c0_i32_223 = arith.constant 0 : i32
      %466 = vector.broadcast %c1_i32_222 : i32 to vector<16x128xi32>
      %467 = vector.broadcast %c0_i32_223 : i32 to vector<16x128xi32>
      %468 = arith.select %465, %466, %467 : vector<16x128xi1>, vector<16x128xi32>
      %469 = vector.shape_cast %468 : vector<16x128xi32> to vector<2x8x128xi32>
      %cst_224 = arith.constant dense<0> : vector<8x128xi32>
      %470 = vector.multi_reduction <add>, %469, %cst_224 [0] : vector<2x8x128xi32> to vector<8x128xi32>
      %471 = vector.shape_cast %470 : vector<8x128xi32> to vector<1x8x128xi32>
      %cst_225 = arith.constant dense<0> : vector<1xi32>
      %472 = vector.multi_reduction <add>, %471, %cst_225 [1, 2] : vector<1x8x128xi32> to vector<1xi32>
      %473 = vector.shape_cast %472 : vector<1xi32> to vector<1x1x1xi32>
      %474 = vector.extract %473[0, 0, 0] : i32 from vector<1x1x1xi32>
      %475 = arith.cmpi slt, %474, %17 : i32
      %476 = arith.select %475, %462, %459 : i32
      %c27_i32 = arith.constant 27 : i32
      %c30_i32_226 = arith.constant 30 : i32
      %477 = arith.subi %c30_i32_226, %c27_i32 : i32
      %c1_i32_227 = arith.constant 1 : i32
      %478 = arith.shli %c1_i32_227, %477 : i32
      %479 = arith.ori %476, %478 : i32
      %c0_228 = arith.constant 0 : index
      %c0_229 = arith.constant 0 : index
      %480 = vector.load %arg8[%c0_228, %c0_229] : memref<16x128xi32, #tpu.memory_space<vmem>>, vector<16x128xi32>
      %481 = vector.broadcast %479 : i32 to vector<16x128xi32>
      %482 = arith.cmpi slt, %480, %481 : vector<16x128xi32>
      %c1_i32_230 = arith.constant 1 : i32
      %c0_i32_231 = arith.constant 0 : i32
      %483 = vector.broadcast %c1_i32_230 : i32 to vector<16x128xi32>
      %484 = vector.broadcast %c0_i32_231 : i32 to vector<16x128xi32>
      %485 = arith.select %482, %483, %484 : vector<16x128xi1>, vector<16x128xi32>
      %486 = vector.shape_cast %485 : vector<16x128xi32> to vector<2x8x128xi32>
      %cst_232 = arith.constant dense<0> : vector<8x128xi32>
      %487 = vector.multi_reduction <add>, %486, %cst_232 [0] : vector<2x8x128xi32> to vector<8x128xi32>
      %488 = vector.shape_cast %487 : vector<8x128xi32> to vector<1x8x128xi32>
      %cst_233 = arith.constant dense<0> : vector<1xi32>
      %489 = vector.multi_reduction <add>, %488, %cst_233 [1, 2] : vector<1x8x128xi32> to vector<1xi32>
      %490 = vector.shape_cast %489 : vector<1xi32> to vector<1x1x1xi32>
      %491 = vector.extract %490[0, 0, 0] : i32 from vector<1x1x1xi32>
      %492 = arith.cmpi slt, %491, %17 : i32
      %493 = arith.select %492, %479, %476 : i32
      %c28_i32 = arith.constant 28 : i32
      %c30_i32_234 = arith.constant 30 : i32
      %494 = arith.subi %c30_i32_234, %c28_i32 : i32
      %c1_i32_235 = arith.constant 1 : i32
      %495 = arith.shli %c1_i32_235, %494 : i32
      %496 = arith.ori %493, %495 : i32
      %c0_236 = arith.constant 0 : index
      %c0_237 = arith.constant 0 : index
      %497 = vector.load %arg8[%c0_236, %c0_237] : memref<16x128xi32, #tpu.memory_space<vmem>>, vector<16x128xi32>
      %498 = vector.broadcast %496 : i32 to vector<16x128xi32>
      %499 = arith.cmpi slt, %497, %498 : vector<16x128xi32>
      %c1_i32_238 = arith.constant 1 : i32
      %c0_i32_239 = arith.constant 0 : i32
      %500 = vector.broadcast %c1_i32_238 : i32 to vector<16x128xi32>
      %501 = vector.broadcast %c0_i32_239 : i32 to vector<16x128xi32>
      %502 = arith.select %499, %500, %501 : vector<16x128xi1>, vector<16x128xi32>
      %503 = vector.shape_cast %502 : vector<16x128xi32> to vector<2x8x128xi32>
      %cst_240 = arith.constant dense<0> : vector<8x128xi32>
      %504 = vector.multi_reduction <add>, %503, %cst_240 [0] : vector<2x8x128xi32> to vector<8x128xi32>
      %505 = vector.shape_cast %504 : vector<8x128xi32> to vector<1x8x128xi32>
      %cst_241 = arith.constant dense<0> : vector<1xi32>
      %506 = vector.multi_reduction <add>, %505, %cst_241 [1, 2] : vector<1x8x128xi32> to vector<1xi32>
      %507 = vector.shape_cast %506 : vector<1xi32> to vector<1x1x1xi32>
      %508 = vector.extract %507[0, 0, 0] : i32 from vector<1x1x1xi32>
      %509 = arith.cmpi slt, %508, %17 : i32
      %510 = arith.select %509, %496, %493 : i32
      %c29_i32 = arith.constant 29 : i32
      %c30_i32_242 = arith.constant 30 : i32
      %511 = arith.subi %c30_i32_242, %c29_i32 : i32
      %c1_i32_243 = arith.constant 1 : i32
      %512 = arith.shli %c1_i32_243, %511 : i32
      %513 = arith.ori %510, %512 : i32
      %c0_244 = arith.constant 0 : index
      %c0_245 = arith.constant 0 : index
      %514 = vector.load %arg8[%c0_244, %c0_245] : memref<16x128xi32, #tpu.memory_space<vmem>>, vector<16x128xi32>
      %515 = vector.broadcast %513 : i32 to vector<16x128xi32>
      %516 = arith.cmpi slt, %514, %515 : vector<16x128xi32>
      %c1_i32_246 = arith.constant 1 : i32
      %c0_i32_247 = arith.constant 0 : i32
      %517 = vector.broadcast %c1_i32_246 : i32 to vector<16x128xi32>
      %518 = vector.broadcast %c0_i32_247 : i32 to vector<16x128xi32>
      %519 = arith.select %516, %517, %518 : vector<16x128xi1>, vector<16x128xi32>
      %520 = vector.shape_cast %519 : vector<16x128xi32> to vector<2x8x128xi32>
      %cst_248 = arith.constant dense<0> : vector<8x128xi32>
      %521 = vector.multi_reduction <add>, %520, %cst_248 [0] : vector<2x8x128xi32> to vector<8x128xi32>
      %522 = vector.shape_cast %521 : vector<8x128xi32> to vector<1x8x128xi32>
      %cst_249 = arith.constant dense<0> : vector<1xi32>
      %523 = vector.multi_reduction <add>, %522, %cst_249 [1, 2] : vector<1x8x128xi32> to vector<1xi32>
      %524 = vector.shape_cast %523 : vector<1xi32> to vector<1x1x1xi32>
      %525 = vector.extract %524[0, 0, 0] : i32 from vector<1x1x1xi32>
      %526 = arith.cmpi slt, %525, %17 : i32
      %527 = arith.select %526, %513, %510 : i32
      %c30_i32_250 = arith.constant 30 : i32
      %c30_i32_251 = arith.constant 30 : i32
      %528 = arith.subi %c30_i32_251, %c30_i32_250 : i32
      %c1_i32_252 = arith.constant 1 : i32
      %529 = arith.shli %c1_i32_252, %528 : i32
      %530 = arith.ori %527, %529 : i32
      %c0_253 = arith.constant 0 : index
      %c0_254 = arith.constant 0 : index
      %531 = vector.load %arg8[%c0_253, %c0_254] : memref<16x128xi32, #tpu.memory_space<vmem>>, vector<16x128xi32>
      %532 = vector.broadcast %530 : i32 to vector<16x128xi32>
      %533 = arith.cmpi slt, %531, %532 : vector<16x128xi32>
      %c1_i32_255 = arith.constant 1 : i32
      %c0_i32_256 = arith.constant 0 : i32
      %534 = vector.broadcast %c1_i32_255 : i32 to vector<16x128xi32>
      %535 = vector.broadcast %c0_i32_256 : i32 to vector<16x128xi32>
      %536 = arith.select %533, %534, %535 : vector<16x128xi1>, vector<16x128xi32>
      %537 = vector.shape_cast %536 : vector<16x128xi32> to vector<2x8x128xi32>
      %cst_257 = arith.constant dense<0> : vector<8x128xi32>
      %538 = vector.multi_reduction <add>, %537, %cst_257 [0] : vector<2x8x128xi32> to vector<8x128xi32>
      %539 = vector.shape_cast %538 : vector<8x128xi32> to vector<1x8x128xi32>
      %cst_258 = arith.constant dense<0> : vector<1xi32>
      %540 = vector.multi_reduction <add>, %539, %cst_258 [1, 2] : vector<1x8x128xi32> to vector<1xi32>
      %541 = vector.shape_cast %540 : vector<1xi32> to vector<1x1x1xi32>
      %542 = vector.extract %541[0, 0, 0] : i32 from vector<1x1x1xi32>
      %543 = arith.cmpi slt, %542, %17 : i32
      %544 = arith.select %543, %530, %527 : i32
      %c31_i32 = arith.constant 31 : i32
      %545 = vector.broadcast %544 : i32 to vector<8x128xi32>
      %546 = tpu.bitcast %545 : vector<8x128xi32> -> vector<8x128xf32>
      %547 = vector.shape_cast %546 : vector<8x128xf32> to vector<1x8x128xf32>
      %cst_259 = arith.constant dense<0xFF800000> : vector<1xf32>
      %548 = vector.multi_reduction <maximumf>, %547, %cst_259 [1, 2] : vector<1x8x128xf32> to vector<1xf32>
      %549 = vector.shape_cast %548 : vector<1xf32> to vector<1x1x1xf32>
      %550 = vector.extract %549[0, 0, 0] : f32 from vector<1x1x1xf32>
      %c0_260 = arith.constant 0 : index
      %551 = memref.load %arg9[%c0_260] : memref<1xf32, #tpu.memory_space<smem>>
      %c0_261 = arith.constant 0 : index
      %552 = memref.load %arg3[%c0_261] : memref<1xi32, #tpu.memory_space<smem>>
      %c0_i32_262 = arith.constant 0 : i32
      %553 = arith.cmpi eq, %552, %c0_i32_262 : i32
      %cst_263 = arith.constant 1.000000e+00 : f32
      %cst_264 = arith.constant 1.000000e-01 : f32
      %554 = arith.subf %cst_263, %cst_264 : f32
      %c0_265 = arith.constant 0 : index
      %555 = memref.load %arg2[%c0_265] : memref<1xf32, #tpu.memory_space<smem>>
      %556 = arith.mulf %554, %555 : f32
      %cst_266 = arith.constant 1.000000e-01 : f32
      %557 = arith.mulf %cst_266, %550 : f32
      %558 = arith.addf %556, %557 : f32
      %559 = arith.select %553, %550, %558 : f32
      %c0_267 = arith.constant 0 : index
      %560 = memref.load %arg7[%c0_267] : memref<1xf32, #tpu.memory_space<smem>>
      memref.store %559, %arg7[%c0_267] : memref<1xf32, #tpu.memory_space<smem>>
      %cst_268 = arith.constant 1.000000e+00 : f32
      %cst_269 = arith.constant 1.000000e-01 : f32
      %561 = arith.subf %cst_268, %cst_269 : f32
      %c0_270 = arith.constant 0 : index
      %562 = memref.load %arg1[%c0_270] : memref<1xf32, #tpu.memory_space<smem>>
      %563 = arith.mulf %561, %562 : f32
      %cst_271 = arith.constant 1.000000e-01 : f32
      %564 = arith.mulf %cst_271, %551 : f32
      %565 = arith.addf %563, %564 : f32
      %566 = arith.select %553, %551, %565 : f32
      %c0_272 = arith.constant 0 : index
      %567 = memref.load %arg6[%c0_272] : memref<1xf32, #tpu.memory_space<smem>>
      memref.store %566, %arg6[%c0_272] : memref<1xf32, #tpu.memory_space<smem>>
    } else {
    }
    return
  }
  func.func @transform_0(%arg0: i32) -> i32 {
    %c0_i32 = arith.constant 0 : i32
    %c0_i32_0 = arith.constant 0 : i32
    return %c0_i32 : i32
  }
  func.func @transform_1(%arg0: i32) -> i32 {
    %c0_i32 = arith.constant 0 : i32
    %c0_i32_0 = arith.constant 0 : i32
    return %c0_i32 : i32
  }
  func.func @transform_2(%arg0: i32) -> i32 {
    %c0_i32 = arith.constant 0 : i32
    %c0_i32_0 = arith.constant 0 : i32
    return %c0_i32 : i32
  }
  func.func @transform_3(%arg0: i32) -> i32 {
    %c0_i32 = arith.constant 0 : i32
    %c0_i32_0 = arith.constant 0 : i32
    return %c0_i32 : i32
  }
  func.func @transform_4(%arg0: i32) -> (i32, i32) {
    %c0_i32 = arith.constant 0 : i32
    %c0_i32_0 = arith.constant 0 : i32
    return %arg0, %c0_i32 : i32, i32
  }
  func.func @transform_5(%arg0: i32) -> i32 {
    %c0_i32 = arith.constant 0 : i32
    %c0_i32_0 = arith.constant 0 : i32
    return %c0_i32 : i32
  }
  func.func @transform_6(%arg0: i32) -> i32 {
    %c0_i32 = arith.constant 0 : i32
    %c0_i32_0 = arith.constant 0 : i32
    return %c0_i32 : i32
  }
}

</mosaic_0001>

<llo_original>
// kernel: tpu_custom_call.1
$region0: #{tpu_custom_call.1}
  #allocation0 [shape = 'u32[]', space=smem, size = 0x4, offset = 0x4, fixed_abs, tag = 'smem constant byte address 0x4 - core index']
  #allocation1 [shape = 'u32[144,128]{1,0:T(1,128)}', space=vmem, size = 0x12000, scoped, tag = 'internal scratch']
  #allocation2 [shape = 's32[16,128]{1,0:T(8,128)}', space=vmem, size = 0x2000, scoped, tag = 'scratch operand']
  #allocation3 [shape = 'f32[1]{0:T(128)}', space=smem, size = 0x200, scoped, tag = 'scratch operand']
  #allocation4 [shape = 'f32[1]{0:T(128)S(6)}', space=smem, size = 0x200, scoped, tag = 'scoped memory for tpu_custom_call.1']
  #allocation5 [shape = 'f32[1]{0:T(128)S(6)}', space=smem, size = 0x200, scoped, tag = 'scoped memory for tpu_custom_call.1']
  #allocation6 [shape = 's32[1]{0:T(128)S(6)}', space=smem, size = 0x200, scoped, tag = 'scoped memory for tpu_custom_call.1']
  #allocation7 [shape = 's32[1]{0:T(128)S(6)}', space=smem, size = 0x200, scoped, tag = 'scoped memory for tpu_custom_call.1']
  %s0 = inlined_call_operand.<no memory space> [shape: f32[1], index: 0, kind: input, shape index: {}]
  %s1 = inlined_call_operand.<no memory space> [shape: f32[1], index: 1, kind: input, shape index: {}]
  %s2 = inlined_call_operand.<no memory space> [shape: s32[1], index: 2, kind: input, shape index: {}]
  %s3 = inlined_call_operand.<no memory space> [shape: s32[1], index: 3, kind: input, shape index: {}]
  %s4 = inlined_call_operand.hbm [shape: f32[16,128], index: 4, kind: input, shape index: {}]
  %s5 = inlined_call_operand.hbm [shape: f32[1], index: 5, kind: output, shape index: {0}]
  %s6 = inlined_call_operand.hbm [shape: f32[1], index: 6, kind: output, shape index: {1}]
  %7 = xla_tuple %s5, %s6
  %s8 = sld [smem:[#allocation0]]
  $region50: #{tpu_custom_call.1} parent=0
    _
  %s10 = ssub.s32 1, %s8
  %s11 = scalar_select 0, %s10, %s8
  %12 = sst [smem:[#allocation4]] %s0
  %13 = sst [smem:[#allocation5]] %s1
  %14 = sst [smem:[#allocation6]] %s2
  %15 = sst [smem:[#allocation7]] %s3
  $region1: #{tpu_custom_call.1} parent=0
    #allocation8 [shape = 'u8[8192]{0}', space=vmem, size = 0x2000, scoped, tag = 'input window, operand 4, single buffered']
    #allocation9 [shape = 's32[1]{0}', space=sflag, size = 0x4, scoped, tag = 'scoped memory for tpu_custom_call.1']
    #allocation10 [shape = 's32[1]{0}', space=sflag, size = 0x4, scoped, tag = 'scoped memory for tpu_custom_call.1']
    #allocation11 [shape = 'u8[512]{0}', space=smem, size = 0x200, scoped, tag = 'output window, operand 0, single buffered']
    #allocation12 [shape = 'u8[512]{0}', space=smem, size = 0x200, scoped, tag = 'output window, operand 1, single buffered']
    #allocation13 [shape = 's32[1]{0}', space=sflag, size = 0x4, scoped, tag = 'scoped memory for tpu_custom_call.1']
    %16 = vsyncpa [#allocation9], 0
    %17 = vsyncpa [#allocation10], 0
    %18 = vsyncpa [#allocation13], 0
    // Predicated region
    $region2: #{tpu_custom_call.1} parent=1 // pred_check
      _
    $region3: #{tpu_custom_call.1} parent=1 // pred_check_branch
      %20 = sbr.rel (0) target = $region5
    $region4: #{tpu_custom_call.1} parent=1 // pred_region
      _
    $region5: #{tpu_custom_call.1} parent=1 // pred_fallthru
      _
    // Predicated region
    $region6: #{tpu_custom_call.1} parent=1 // pred_check
      _
    $region7: #{tpu_custom_call.1} parent=1 // pred_check_branch
      %22 = sbr.rel (0) target = $region9
    $region8: #{tpu_custom_call.1} parent=1 // pred_region
      _
    $region9: #{tpu_custom_call.1} parent=1 // pred_fallthru
      _
    // Predicated region
    $region10: #{tpu_custom_call.1} parent=1 // pred_check
      _
    $region11: #{tpu_custom_call.1} parent=1 // pred_check_branch
      %24 = sbr.rel (0) target = $region13
    $region12: #{tpu_custom_call.1} parent=1 // pred_region
      _
    $region13: #{tpu_custom_call.1} parent=1 // pred_fallthru
      _
    // Predicated region
    $region14: #{tpu_custom_call.1} parent=1 // pred_check
      _
    $region15: #{tpu_custom_call.1} parent=1 // pred_check_branch
      %26 = sbr.rel (0) target = $region17
    $region16: #{tpu_custom_call.1} parent=1 // pred_region
      _
    $region17: #{tpu_custom_call.1} parent=1 // pred_fallthru
      _
    // Predicated region
    $region18: #{tpu_custom_call.1} parent=1 // pred_check
      _
    $region19: #{tpu_custom_call.1} parent=1 // pred_check_branch
      %28 = sbr.rel (0) target = $region21
    $region20: #{tpu_custom_call.1} parent=1 // pred_region
      %s30 = ssub.s32 256, 256
      %31 = vsyncadd [#allocation9], %s30
      %s32 = sshll.u32 [#allocation8], 4
      %s33 = int_to_ptr.vmem [resolvable:$true] %s32
      %38 = dma.hbm_to_vmem [thread:$0]  %s4, 256, %s33, [#allocation9], 128, 128, 8
    $region21: #{tpu_custom_call.1} parent=1 // pred_fallthru
      _
    // Predicated region
    $region22: #{tpu_custom_call.1} parent=1 // pred_check
      _
    $region23: #{tpu_custom_call.1} parent=1 // pred_check_branch
      %40 = sbr.rel (0) target = $region25
    $region24: #{tpu_custom_call.1} parent=1 // pred_region
      %41 = dma.done [#allocation9], 256
    $region25: #{tpu_custom_call.1} parent=1 // pred_fallthru
      _
    %p42 = scmp.eq.s32.totalorder 0, 0
    // Predicated region
    $region26: #{tpu_custom_call.1} parent=1 // pred_check
      %p43 = pneg %p42
    $region27: #{tpu_custom_call.1} parent=1 // pred_check_branch
      %45 = sbr.rel (%p43) target = $region29
    $region28: #{tpu_custom_call.1} parent=1 // pred_region
      %s46 = scalar_lea.smem [#allocation3], 0
      %47 = sst [smem:[%s46]] inf
    $region29: #{tpu_custom_call.1} parent=1 // pred_fallthru
      _
    %v48 = vld [vmem:[#allocation8] sm:$0xff]
    %v49 = vld [vmem:[#allocation8 + $0x8] sm:$0xff]
    %v50 = vand.u32 2147483647, %v48
    %v51 = vand.u32 2147483647, %v49
    %54 = vst [vmem:[#allocation2] sm:$0xff] %v50
    %55 = vst [vmem:[#allocation2 + $0x8] sm:$0xff] %v51
    %s56 = sld [smem:[#allocation3]]
    %v57 = vmin.f32 %v48, %v49
    %58 = vmin.xlane.f32.xlu0 %v57
    %v59 = vpop.xlane.xlu0 %58
    %v60 = vrot.slane %v59, 4
    %v61 = vmin.f32 %v59, %v60
    %v62 = vrot.slane %v61, 2
    %v63 = vmin.f32 %v61, %v62
    %v64 = vrot.slane %v63, 1
    %v65 = vmin.f32 %v63, %v64
    %s66 = vtos %v65
    %s67 = smin.f32 %s56, %s66
    %s68 = scalar_lea.smem [#allocation3], 0
    %69 = sst [smem:[%s68]] %s67
    // Predicated region
    $region30: #{tpu_custom_call.1} parent=1 // pred_check
      %p70 = pneg %p42
    $region31: #{tpu_custom_call.1} parent=1 // pred_check_branch
      %72 = sbr.rel (%p70) target = $region33
    $region32: #{tpu_custom_call.1} parent=1 // pred_region
      %s73 = sld [smem:[#allocation7]]
      %v74 = vld [vmem:[#allocation2] sm:$0xff]
      %v75 = vld [vmem:[#allocation2 + $0x8] sm:$0xff]
      %vm76 = vcmp.lt.s32.totalorder %v74, 1073741824
      %vm77 = vcmp.lt.s32.totalorder %v75, 1073741824
      %v78 = vsel %vm76, 1, 0
      %v79 = vsel %vm77, 1, 0
      %v80 = vadd.s32 %v78, %v79
      %v81 = vand.u32 %v80, 65535
      %v82 = vshrl.u32 %v80, 16
      %v83 = vcvt.s32.f32 %v81
      %v84 = vcvt.s32.f32 %v82
      %85 = vadd.xlane.f32.xlu0 %v83
      %v86 = vpop.xlane.xlu0 %85
      %87 = vadd.xlane.f32.xlu0 %v84
      %v88 = vpop.xlane.xlu0 %87
      %v89 = vcvt.f32.s32 %v86
      %v90 = vcvt.f32.s32 %v88
      %v91 = vshll.u32 %v90, 16
      %v92 = vadd.s32 %v91, %v89
      %v93 = vrot.slane %v92, 4
      %v94 = vadd.s32 %v92, %v93
      %v95 = vrot.slane %v94, 2
      %v96 = vadd.s32 %v94, %v95
      %v97 = vrot.slane %v96, 1
      %v98 = vadd.s32 %v96, %v97
      %s99 = vtos %v98
      %p100 = scmp.lt.s32.totalorder %s99, %s73
      %s101 = scalar_select %p100, 1073741824, 0
      %s102 = sor.u32 %s101, 536870912
      %v103 = vstv %s102
      %vm104 = vcmp.lt.s32.totalorder %v74, %v103
      %vm105 = vcmp.lt.s32.totalorder %v75, %v103
      %v106 = vsel %vm104, 1, 0
      %v107 = vsel %vm105, 1, 0
      %v108 = vadd.s32 %v106, %v107
      %v109 = vand.u32 %v108, 65535
      %v110 = vshrl.u32 %v108, 16
      %v111 = vcvt.s32.f32 %v109
      %v112 = vcvt.s32.f32 %v110
      %113 = vadd.xlane.f32.xlu0 %v111
      %v114 = vpop.xlane.xlu0 %113
      %115 = vadd.xlane.f32.xlu0 %v112
      %v116 = vpop.xlane.xlu0 %115
      %v117 = vcvt.f32.s32 %v114
      %v118 = vcvt.f32.s32 %v116
      %v119 = vshll.u32 %v118, 16
      %v120 = vadd.s32 %v119, %v117
      %v121 = vrot.slane %v120, 4
      %v122 = vadd.s32 %v120, %v121
      %v123 = vrot.slane %v122, 2
      %v124 = vadd.s32 %v122, %v123
      %v125 = vrot.slane %v124, 1
      %v126 = vadd.s32 %v124, %v125
      %s127 = vtos %v126
      %p128 = scmp.lt.s32.totalorder %s127, %s73
      %s129 = scalar_select %p128, %s102, %s101
      %s130 = sor.u32 %s129, 268435456
      %v131 = vstv %s130
      %vm132 = vcmp.lt.s32.totalorder %v74, %v131
      %vm133 = vcmp.lt.s32.totalorder %v75, %v131
      %v134 = vsel %vm132, 1, 0
      %v135 = vsel %vm133, 1, 0
      %v136 = vadd.s32 %v134, %v135
      %v137 = vand.u32 %v136, 65535
      %v138 = vshrl.u32 %v136, 16
      %v139 = vcvt.s32.f32 %v137
      %v140 = vcvt.s32.f32 %v138
      %141 = vadd.xlane.f32.xlu0 %v139
      %v142 = vpop.xlane.xlu0 %141
      %143 = vadd.xlane.f32.xlu0 %v140
      %v144 = vpop.xlane.xlu0 %143
      %v145 = vcvt.f32.s32 %v142
      %v146 = vcvt.f32.s32 %v144
      %v147 = vshll.u32 %v146, 16
      %v148 = vadd.s32 %v147, %v145
      %v149 = vrot.slane %v148, 4
      %v150 = vadd.s32 %v148, %v149
      %v151 = vrot.slane %v150, 2
      %v152 = vadd.s32 %v150, %v151
      %v153 = vrot.slane %v152, 1
      %v154 = vadd.s32 %v152, %v153
      %s155 = vtos %v154
      %p156 = scmp.lt.s32.totalorder %s155, %s73
      %s157 = scalar_select %p156, %s130, %s129
      %s158 = sor.u32 %s157, 134217728
      %v159 = vstv %s158
      %vm160 = vcmp.lt.s32.totalorder %v74, %v159
      %vm161 = vcmp.lt.s32.totalorder %v75, %v159
      %v162 = vsel %vm160, 1, 0
      %v163 = vsel %vm161, 1, 0
      %v164 = vadd.s32 %v162, %v163
      %v165 = vand.u32 %v164, 65535
      %v166 = vshrl.u32 %v164, 16
      %v167 = vcvt.s32.f32 %v165
      %v168 = vcvt.s32.f32 %v166
      %169 = vadd.xlane.f32.xlu0 %v167
      %v170 = vpop.xlane.xlu0 %169
      %171 = vadd.xlane.f32.xlu0 %v168
      %v172 = vpop.xlane.xlu0 %171
      %v173 = vcvt.f32.s32 %v170
      %v174 = vcvt.f32.s32 %v172
      %v175 = vshll.u32 %v174, 16
      %v176 = vadd.s32 %v175, %v173
      %v177 = vrot.slane %v176, 4
      %v178 = vadd.s32 %v176, %v177
      %v179 = vrot.slane %v178, 2
      %v180 = vadd.s32 %v178, %v179
      %v181 = vrot.slane %v180, 1
      %v182 = vadd.s32 %v180, %v181
      %s183 = vtos %v182
      %p184 = scmp.lt.s32.totalorder %s183, %s73
      %s185 = scalar_select %p184, %s158, %s157
      %s186 = sor.u32 %s185, 67108864
      %v187 = vstv %s186
      %vm188 = vcmp.lt.s32.totalorder %v74, %v187
      %vm189 = vcmp.lt.s32.totalorder %v75, %v187
      %v190 = vsel %vm188, 1, 0
      %v191 = vsel %vm189, 1, 0
      %v192 = vadd.s32 %v190, %v191
      %v193 = vand.u32 %v192, 65535
      %v194 = vshrl.u32 %v192, 16
      %v195 = vcvt.s32.f32 %v193
      %v196 = vcvt.s32.f32 %v194
      %197 = vadd.xlane.f32.xlu0 %v195
      %v198 = vpop.xlane.xlu0 %197
      %199 = vadd.xlane.f32.xlu0 %v196
      %v200 = vpop.xlane.xlu0 %199
      %v201 = vcvt.f32.s32 %v198
      %v202 = vcvt.f32.s32 %v200
      %v203 = vshll.u32 %v202, 16
      %v204 = vadd.s32 %v203, %v201
      %v205 = vrot.slane %v204, 4
      %v206 = vadd.s32 %v204, %v205
      %v207 = vrot.slane %v206, 2
      %v208 = vadd.s32 %v206, %v207
      %v209 = vrot.slane %v208, 1
      %v210 = vadd.s32 %v208, %v209
      %s211 = vtos %v210
      %p212 = scmp.lt.s32.totalorder %s211, %s73
      %s213 = scalar_select %p212, %s186, %s185
      %s214 = sor.u32 %s213, 33554432
      %v215 = vstv %s214
      %vm216 = vcmp.lt.s32.totalorder %v74, %v215
      %vm217 = vcmp.lt.s32.totalorder %v75, %v215
      %v218 = vsel %vm216, 1, 0
      %v219 = vsel %vm217, 1, 0
      %v220 = vadd.s32 %v218, %v219
      %v221 = vand.u32 %v220, 65535
      %v222 = vshrl.u32 %v220, 16
      %v223 = vcvt.s32.f32 %v221
      %v224 = vcvt.s32.f32 %v222
      %225 = vadd.xlane.f32.xlu0 %v223
      %v226 = vpop.xlane.xlu0 %225
      %227 = vadd.xlane.f32.xlu0 %v224
      %v228 = vpop.xlane.xlu0 %227
      %v229 = vcvt.f32.s32 %v226
      %v230 = vcvt.f32.s32 %v228
      %v231 = vshll.u32 %v230, 16
      %v232 = vadd.s32 %v231, %v229
      %v233 = vrot.slane %v232, 4
      %v234 = vadd.s32 %v232, %v233
      %v235 = vrot.slane %v234, 2
      %v236 = vadd.s32 %v234, %v235
      %v237 = vrot.slane %v236, 1
      %v238 = vadd.s32 %v236, %v237
      %s239 = vtos %v238
      %p240 = scmp.lt.s32.totalorder %s239, %s73
      %s241 = scalar_select %p240, %s214, %s213
      %s242 = sor.u32 %s241, 16777216
      %v243 = vstv %s242
      %vm244 = vcmp.lt.s32.totalorder %v74, %v243
      %vm245 = vcmp.lt.s32.totalorder %v75, %v243
      %v246 = vsel %vm244, 1, 0
      %v247 = vsel %vm245, 1, 0
      %v248 = vadd.s32 %v246, %v247
      %v249 = vand.u32 %v248, 65535
      %v250 = vshrl.u32 %v248, 16
      %v251 = vcvt.s32.f32 %v249
      %v252 = vcvt.s32.f32 %v250
      %253 = vadd.xlane.f32.xlu0 %v251
      %v254 = vpop.xlane.xlu0 %253
      %255 = vadd.xlane.f32.xlu0 %v252
      %v256 = vpop.xlane.xlu0 %255
      %v257 = vcvt.f32.s32 %v254
      %v258 = vcvt.f32.s32 %v256
      %v259 = vshll.u32 %v258, 16
      %v260 = vadd.s32 %v259, %v257
      %v261 = vrot.slane %v260, 4
      %v262 = vadd.s32 %v260, %v261
      %v263 = vrot.slane %v262, 2
      %v264 = vadd.s32 %v262, %v263
      %v265 = vrot.slane %v264, 1
      %v266 = vadd.s32 %v264, %v265
      %s267 = vtos %v266
      %p268 = scmp.lt.s32.totalorder %s267, %s73
      %s269 = scalar_select %p268, %s242, %s241
      %s270 = sor.u32 %s269, 8388608
      %v271 = vstv %s270
      %vm272 = vcmp.lt.s32.totalorder %v74, %v271
      %vm273 = vcmp.lt.s32.totalorder %v75, %v271
      %v274 = vsel %vm272, 1, 0
      %v275 = vsel %vm273, 1, 0
      %v276 = vadd.s32 %v274, %v275
      %v277 = vand.u32 %v276, 65535
      %v278 = vshrl.u32 %v276, 16
      %v279 = vcvt.s32.f32 %v277
      %v280 = vcvt.s32.f32 %v278
      %281 = vadd.xlane.f32.xlu0 %v279
      %v282 = vpop.xlane.xlu0 %281
      %283 = vadd.xlane.f32.xlu0 %v280
      %v284 = vpop.xlane.xlu0 %283
      %v285 = vcvt.f32.s32 %v282
      %v286 = vcvt.f32.s32 %v284
      %v287 = vshll.u32 %v286, 16
      %v288 = vadd.s32 %v287, %v285
      %v289 = vrot.slane %v288, 4
      %v290 = vadd.s32 %v288, %v289
      %v291 = vrot.slane %v290, 2
      %v292 = vadd.s32 %v290, %v291
      %v293 = vrot.slane %v292, 1
      %v294 = vadd.s32 %v292, %v293
      %s295 = vtos %v294
      %p296 = scmp.lt.s32.totalorder %s295, %s73
      %s297 = scalar_select %p296, %s270, %s269
      %s298 = sor.u32 %s297, 4194304
      %v299 = vstv %s298
      %vm300 = vcmp.lt.s32.totalorder %v74, %v299
      %vm301 = vcmp.lt.s32.totalorder %v75, %v299
      %v302 = vsel %vm300, 1, 0
      %v303 = vsel %vm301, 1, 0
      %v304 = vadd.s32 %v302, %v303
      %v305 = vand.u32 %v304, 65535
      %v306 = vshrl.u32 %v304, 16
      %v307 = vcvt.s32.f32 %v305
      %v308 = vcvt.s32.f32 %v306
      %309 = vadd.xlane.f32.xlu0 %v307
      %v310 = vpop.xlane.xlu0 %309
      %311 = vadd.xlane.f32.xlu0 %v308
      %v312 = vpop.xlane.xlu0 %311
      %v313 = vcvt.f32.s32 %v310
      %v314 = vcvt.f32.s32 %v312
      %v315 = vshll.u32 %v314, 16
      %v316 = vadd.s32 %v315, %v313
      %v317 = vrot.slane %v316, 4
      %v318 = vadd.s32 %v316, %v317
      %v319 = vrot.slane %v318, 2
      %v320 = vadd.s32 %v318, %v319
      %v321 = vrot.slane %v320, 1
      %v322 = vadd.s32 %v320, %v321
      %s323 = vtos %v322
      %p324 = scmp.lt.s32.totalorder %s323, %s73
      %s325 = scalar_select %p324, %s298, %s297
      %s326 = sor.u32 %s325, 2097152
      %v327 = vstv %s326
      %vm328 = vcmp.lt.s32.totalorder %v74, %v327
      %vm329 = vcmp.lt.s32.totalorder %v75, %v327
      %v330 = vsel %vm328, 1, 0
      %v331 = vsel %vm329, 1, 0
      %v332 = vadd.s32 %v330, %v331
      %v333 = vand.u32 %v332, 65535
      %v334 = vshrl.u32 %v332, 16
      %v335 = vcvt.s32.f32 %v333
      %v336 = vcvt.s32.f32 %v334
      %337 = vadd.xlane.f32.xlu0 %v335
      %v338 = vpop.xlane.xlu0 %337
      %339 = vadd.xlane.f32.xlu0 %v336
      %v340 = vpop.xlane.xlu0 %339
      %v341 = vcvt.f32.s32 %v338
      %v342 = vcvt.f32.s32 %v340
      %v343 = vshll.u32 %v342, 16
      %v344 = vadd.s32 %v343, %v341
      %v345 = vrot.slane %v344, 4
      %v346 = vadd.s32 %v344, %v345
      %v347 = vrot.slane %v346, 2
      %v348 = vadd.s32 %v346, %v347
      %v349 = vrot.slane %v348, 1
      %v350 = vadd.s32 %v348, %v349
      %s351 = vtos %v350
      %p352 = scmp.lt.s32.totalorder %s351, %s73
      %s353 = scalar_select %p352, %s326, %s325
      %s354 = sor.u32 %s353, 1048576
      %v355 = vstv %s354
      %vm356 = vcmp.lt.s32.totalorder %v74, %v355
      %vm357 = vcmp.lt.s32.totalorder %v75, %v355
      %v358 = vsel %vm356, 1, 0
      %v359 = vsel %vm357, 1, 0
      %v360 = vadd.s32 %v358, %v359
      %v361 = vand.u32 %v360, 65535
      %v362 = vshrl.u32 %v360, 16
      %v363 = vcvt.s32.f32 %v361
      %v364 = vcvt.s32.f32 %v362
      %365 = vadd.xlane.f32.xlu0 %v363
      %v366 = vpop.xlane.xlu0 %365
      %367 = vadd.xlane.f32.xlu0 %v364
      %v368 = vpop.xlane.xlu0 %367
      %v369 = vcvt.f32.s32 %v366
      %v370 = vcvt.f32.s32 %v368
      %v371 = vshll.u32 %v370, 16
      %v372 = vadd.s32 %v371, %v369
      %v373 = vrot.slane %v372, 4
      %v374 = vadd.s32 %v372, %v373
      %v375 = vrot.slane %v374, 2
      %v376 = vadd.s32 %v374, %v375
      %v377 = vrot.slane %v376, 1
      %v378 = vadd.s32 %v376, %v377
      %s379 = vtos %v378
      %p380 = scmp.lt.s32.totalorder %s379, %s73
      %s381 = scalar_select %p380, %s354, %s353
      %s382 = sor.u32 %s381, 524288
      %v383 = vstv %s382
      %vm384 = vcmp.lt.s32.totalorder %v74, %v383
      %vm385 = vcmp.lt.s32.totalorder %v75, %v383
      %v386 = vsel %vm384, 1, 0
      %v387 = vsel %vm385, 1, 0
      %v388 = vadd.s32 %v386, %v387
      %v389 = vand.u32 %v388, 65535
      %v390 = vshrl.u32 %v388, 16
      %v391 = vcvt.s32.f32 %v389
      %v392 = vcvt.s32.f32 %v390
      %393 = vadd.xlane.f32.xlu0 %v391
      %v394 = vpop.xlane.xlu0 %393
      %395 = vadd.xlane.f32.xlu0 %v392
      %v396 = vpop.xlane.xlu0 %395
      %v397 = vcvt.f32.s32 %v394
      %v398 = vcvt.f32.s32 %v396
      %v399 = vshll.u32 %v398, 16
      %v400 = vadd.s32 %v399, %v397
      %v401 = vrot.slane %v400, 4
      %v402 = vadd.s32 %v400, %v401
      %v403 = vrot.slane %v402, 2
      %v404 = vadd.s32 %v402, %v403
      %v405 = vrot.slane %v404, 1
      %v406 = vadd.s32 %v404, %v405
      %s407 = vtos %v406
      %p408 = scmp.lt.s32.totalorder %s407, %s73
      %s409 = scalar_select %p408, %s382, %s381
      %s410 = sor.u32 %s409, 262144
      %v411 = vstv %s410
      %vm412 = vcmp.lt.s32.totalorder %v74, %v411
      %vm413 = vcmp.lt.s32.totalorder %v75, %v411
      %v414 = vsel %vm412, 1, 0
      %v415 = vsel %vm413, 1, 0
      %v416 = vadd.s32 %v414, %v415
      %v417 = vand.u32 %v416, 65535
      %v418 = vshrl.u32 %v416, 16
      %v419 = vcvt.s32.f32 %v417
      %v420 = vcvt.s32.f32 %v418
      %421 = vadd.xlane.f32.xlu0 %v419
      %v422 = vpop.xlane.xlu0 %421
      %423 = vadd.xlane.f32.xlu0 %v420
      %v424 = vpop.xlane.xlu0 %423
      %v425 = vcvt.f32.s32 %v422
      %v426 = vcvt.f32.s32 %v424
      %v427 = vshll.u32 %v426, 16
      %v428 = vadd.s32 %v427, %v425
      %v429 = vrot.slane %v428, 4
      %v430 = vadd.s32 %v428, %v429
      %v431 = vrot.slane %v430, 2
      %v432 = vadd.s32 %v430, %v431
      %v433 = vrot.slane %v432, 1
      %v434 = vadd.s32 %v432, %v433
      %s435 = vtos %v434
      %p436 = scmp.lt.s32.totalorder %s435, %s73
      %s437 = scalar_select %p436, %s410, %s409
      %s438 = sor.u32 %s437, 131072
      %v439 = vstv %s438
      %vm440 = vcmp.lt.s32.totalorder %v74, %v439
      %vm441 = vcmp.lt.s32.totalorder %v75, %v439
      %v442 = vsel %vm440, 1, 0
      %v443 = vsel %vm441, 1, 0
      %v444 = vadd.s32 %v442, %v443
      %v445 = vand.u32 %v444, 65535
      %v446 = vshrl.u32 %v444, 16
      %v447 = vcvt.s32.f32 %v445
      %v448 = vcvt.s32.f32 %v446
      %449 = vadd.xlane.f32.xlu0 %v447
      %v450 = vpop.xlane.xlu0 %449
      %451 = vadd.xlane.f32.xlu0 %v448
      %v452 = vpop.xlane.xlu0 %451
      %v453 = vcvt.f32.s32 %v450
      %v454 = vcvt.f32.s32 %v452
      %v455 = vshll.u32 %v454, 16
      %v456 = vadd.s32 %v455, %v453
      %v457 = vrot.slane %v456, 4
      %v458 = vadd.s32 %v456, %v457
      %v459 = vrot.slane %v458, 2
      %v460 = vadd.s32 %v458, %v459
      %v461 = vrot.slane %v460, 1
      %v462 = vadd.s32 %v460, %v461
      %s463 = vtos %v462
      %p464 = scmp.lt.s32.totalorder %s463, %s73
      %s465 = scalar_select %p464, %s438, %s437
      %s466 = sor.u32 %s465, 65536
      %v467 = vstv %s466
      %vm468 = vcmp.lt.s32.totalorder %v74, %v467
      %vm469 = vcmp.lt.s32.totalorder %v75, %v467
      %v470 = vsel %vm468, 1, 0
      %v471 = vsel %vm469, 1, 0
      %v472 = vadd.s32 %v470, %v471
      %v473 = vand.u32 %v472, 65535
      %v474 = vshrl.u32 %v472, 16
      %v475 = vcvt.s32.f32 %v473
      %v476 = vcvt.s32.f32 %v474
      %477 = vadd.xlane.f32.xlu0 %v475
      %v478 = vpop.xlane.xlu0 %477
      %479 = vadd.xlane.f32.xlu0 %v476
      %v480 = vpop.xlane.xlu0 %479
      %v481 = vcvt.f32.s32 %v478
      %v482 = vcvt.f32.s32 %v480
      %v483 = vshll.u32 %v482, 16
      %v484 = vadd.s32 %v483, %v481
      %v485 = vrot.slane %v484, 4
      %v486 = vadd.s32 %v484, %v485
      %v487 = vrot.slane %v486, 2
      %v488 = vadd.s32 %v486, %v487
      %v489 = vrot.slane %v488, 1
      %v490 = vadd.s32 %v488, %v489
      %s491 = vtos %v490
      %p492 = scmp.lt.s32.totalorder %s491, %s73
      %s493 = scalar_select %p492, %s466, %s465
      %s494 = sor.u32 %s493, 32768
      %v495 = vstv %s494
      %vm496 = vcmp.lt.s32.totalorder %v74, %v495
      %vm497 = vcmp.lt.s32.totalorder %v75, %v495
      %v498 = vsel %vm496, 1, 0
      %v499 = vsel %vm497, 1, 0
      %v500 = vadd.s32 %v498, %v499
      %v501 = vand.u32 %v500, 65535
      %v502 = vshrl.u32 %v500, 16
      %v503 = vcvt.s32.f32 %v501
      %v504 = vcvt.s32.f32 %v502
      %505 = vadd.xlane.f32.xlu0 %v503
      %v506 = vpop.xlane.xlu0 %505
      %507 = vadd.xlane.f32.xlu0 %v504
      %v508 = vpop.xlane.xlu0 %507
      %v509 = vcvt.f32.s32 %v506
      %v510 = vcvt.f32.s32 %v508
      %v511 = vshll.u32 %v510, 16
      %v512 = vadd.s32 %v511, %v509
      %v513 = vrot.slane %v512, 4
      %v514 = vadd.s32 %v512, %v513
      %v515 = vrot.slane %v514, 2
      %v516 = vadd.s32 %v514, %v515
      %v517 = vrot.slane %v516, 1
      %v518 = vadd.s32 %v516, %v517
      %s519 = vtos %v518
      %p520 = scmp.lt.s32.totalorder %s519, %s73
      %s521 = scalar_select %p520, %s494, %s493
      %s522 = sor.u32 %s521, 16384
      %v523 = vstv %s522
      %vm524 = vcmp.lt.s32.totalorder %v74, %v523
      %vm525 = vcmp.lt.s32.totalorder %v75, %v523
      %v526 = vsel %vm524, 1, 0
      %v527 = vsel %vm525, 1, 0
      %v528 = vadd.s32 %v526, %v527
      %v529 = vand.u32 %v528, 65535
      %v530 = vshrl.u32 %v528, 16
      %v531 = vcvt.s32.f32 %v529
      %v532 = vcvt.s32.f32 %v530
      %533 = vadd.xlane.f32.xlu0 %v531
      %v534 = vpop.xlane.xlu0 %533
      %535 = vadd.xlane.f32.xlu0 %v532
      %v536 = vpop.xlane.xlu0 %535
      %v537 = vcvt.f32.s32 %v534
      %v538 = vcvt.f32.s32 %v536
      %v539 = vshll.u32 %v538, 16
      %v540 = vadd.s32 %v539, %v537
      %v541 = vrot.slane %v540, 4
      %v542 = vadd.s32 %v540, %v541
      %v543 = vrot.slane %v542, 2
      %v544 = vadd.s32 %v542, %v543
      %v545 = vrot.slane %v544, 1
      %v546 = vadd.s32 %v544, %v545
      %s547 = vtos %v546
      %p548 = scmp.lt.s32.totalorder %s547, %s73
      %s549 = scalar_select %p548, %s522, %s521
      %s550 = sor.u32 %s549, 8192
      %v551 = vstv %s550
      %vm552 = vcmp.lt.s32.totalorder %v74, %v551
      %vm553 = vcmp.lt.s32.totalorder %v75, %v551
      %v554 = vsel %vm552, 1, 0
      %v555 = vsel %vm553, 1, 0
      %v556 = vadd.s32 %v554, %v555
      %v557 = vand.u32 %v556, 65535
      %v558 = vshrl.u32 %v556, 16
      %v559 = vcvt.s32.f32 %v557
      %v560 = vcvt.s32.f32 %v558
      %561 = vadd.xlane.f32.xlu0 %v559
      %v562 = vpop.xlane.xlu0 %561
      %563 = vadd.xlane.f32.xlu0 %v560
      %v564 = vpop.xlane.xlu0 %563
      %v565 = vcvt.f32.s32 %v562
      %v566 = vcvt.f32.s32 %v564
      %v567 = vshll.u32 %v566, 16
      %v568 = vadd.s32 %v567, %v565
      %v569 = vrot.slane %v568, 4
      %v570 = vadd.s32 %v568, %v569
      %v571 = vrot.slane %v570, 2
      %v572 = vadd.s32 %v570, %v571
      %v573 = vrot.slane %v572, 1
      %v574 = vadd.s32 %v572, %v573
      %s575 = vtos %v574
      %p576 = scmp.lt.s32.totalorder %s575, %s73
      %s577 = scalar_select %p576, %s550, %s549
      %s578 = sor.u32 %s577, 4096
      %v579 = vstv %s578
      %vm580 = vcmp.lt.s32.totalorder %v74, %v579
      %vm581 = vcmp.lt.s32.totalorder %v75, %v579
      %v582 = vsel %vm580, 1, 0
      %v583 = vsel %vm581, 1, 0
      %v584 = vadd.s32 %v582, %v583
      %v585 = vand.u32 %v584, 65535
      %v586 = vshrl.u32 %v584, 16
      %v587 = vcvt.s32.f32 %v585
      %v588 = vcvt.s32.f32 %v586
      %589 = vadd.xlane.f32.xlu0 %v587
      %v590 = vpop.xlane.xlu0 %589
      %591 = vadd.xlane.f32.xlu0 %v588
      %v592 = vpop.xlane.xlu0 %591
      %v593 = vcvt.f32.s32 %v590
      %v594 = vcvt.f32.s32 %v592
      %v595 = vshll.u32 %v594, 16
      %v596 = vadd.s32 %v595, %v593
      %v597 = vrot.slane %v596, 4
      %v598 = vadd.s32 %v596, %v597
      %v599 = vrot.slane %v598, 2
      %v600 = vadd.s32 %v598, %v599
      %v601 = vrot.slane %v600, 1
      %v602 = vadd.s32 %v600, %v601
      %s603 = vtos %v602
      %p604 = scmp.lt.s32.totalorder %s603, %s73
      %s605 = scalar_select %p604, %s578, %s577
      %s606 = sor.u32 %s605, 2048
      %v607 = vstv %s606
      %vm608 = vcmp.lt.s32.totalorder %v74, %v607
      %vm609 = vcmp.lt.s32.totalorder %v75, %v607
      %v610 = vsel %vm608, 1, 0
      %v611 = vsel %vm609, 1, 0
      %v612 = vadd.s32 %v610, %v611
      %v613 = vand.u32 %v612, 65535
      %v614 = vshrl.u32 %v612, 16
      %v615 = vcvt.s32.f32 %v613
      %v616 = vcvt.s32.f32 %v614
      %617 = vadd.xlane.f32.xlu0 %v615
      %v618 = vpop.xlane.xlu0 %617
      %619 = vadd.xlane.f32.xlu0 %v616
      %v620 = vpop.xlane.xlu0 %619
      %v621 = vcvt.f32.s32 %v618
      %v622 = vcvt.f32.s32 %v620
      %v623 = vshll.u32 %v622, 16
      %v624 = vadd.s32 %v623, %v621
      %v625 = vrot.slane %v624, 4
      %v626 = vadd.s32 %v624, %v625
      %v627 = vrot.slane %v626, 2
      %v628 = vadd.s32 %v626, %v627
      %v629 = vrot.slane %v628, 1
      %v630 = vadd.s32 %v628, %v629
      %s631 = vtos %v630
      %p632 = scmp.lt.s32.totalorder %s631, %s73
      %s633 = scalar_select %p632, %s606, %s605
      %s634 = sor.u32 %s633, 1024
      %v635 = vstv %s634
      %vm636 = vcmp.lt.s32.totalorder %v74, %v635
      %vm637 = vcmp.lt.s32.totalorder %v75, %v635
      %v638 = vsel %vm636, 1, 0
      %v639 = vsel %vm637, 1, 0
      %v640 = vadd.s32 %v638, %v639
      %v641 = vand.u32 %v640, 65535
      %v642 = vshrl.u32 %v640, 16
      %v643 = vcvt.s32.f32 %v641
      %v644 = vcvt.s32.f32 %v642
      %645 = vadd.xlane.f32.xlu0 %v643
      %v646 = vpop.xlane.xlu0 %645
      %647 = vadd.xlane.f32.xlu0 %v644
      %v648 = vpop.xlane.xlu0 %647
      %v649 = vcvt.f32.s32 %v646
      %v650 = vcvt.f32.s32 %v648
      %v651 = vshll.u32 %v650, 16
      %v652 = vadd.s32 %v651, %v649
      %v653 = vrot.slane %v652, 4
      %v654 = vadd.s32 %v652, %v653
      %v655 = vrot.slane %v654, 2
      %v656 = vadd.s32 %v654, %v655
      %v657 = vrot.slane %v656, 1
      %v658 = vadd.s32 %v656, %v657
      %s659 = vtos %v658
      %p660 = scmp.lt.s32.totalorder %s659, %s73
      %s661 = scalar_select %p660, %s634, %s633
      %s662 = sor.u32 %s661, 512
      %v663 = vstv %s662
      %vm664 = vcmp.lt.s32.totalorder %v74, %v663
      %vm665 = vcmp.lt.s32.totalorder %v75, %v663
      %v666 = vsel %vm664, 1, 0
      %v667 = vsel %vm665, 1, 0
      %v668 = vadd.s32 %v666, %v667
      %v669 = vand.u32 %v668, 65535
      %v670 = vshrl.u32 %v668, 16
      %v671 = vcvt.s32.f32 %v669
      %v672 = vcvt.s32.f32 %v670
      %673 = vadd.xlane.f32.xlu0 %v671
      %v674 = vpop.xlane.xlu0 %673
      %675 = vadd.xlane.f32.xlu0 %v672
      %v676 = vpop.xlane.xlu0 %675
      %v677 = vcvt.f32.s32 %v674
      %v678 = vcvt.f32.s32 %v676
      %v679 = vshll.u32 %v678, 16
      %v680 = vadd.s32 %v679, %v677
      %v681 = vrot.slane %v680, 4
      %v682 = vadd.s32 %v680, %v681
      %v683 = vrot.slane %v682, 2
      %v684 = vadd.s32 %v682, %v683
      %v685 = vrot.slane %v684, 1
      %v686 = vadd.s32 %v684, %v685
      %s687 = vtos %v686
      %p688 = scmp.lt.s32.totalorder %s687, %s73
      %s689 = scalar_select %p688, %s662, %s661
      %s690 = sor.u32 %s689, 256
      %v691 = vstv %s690
      %vm692 = vcmp.lt.s32.totalorder %v74, %v691
      %vm693 = vcmp.lt.s32.totalorder %v75, %v691
      %v694 = vsel %vm692, 1, 0
      %v695 = vsel %vm693, 1, 0
      %v696 = vadd.s32 %v694, %v695
      %v697 = vand.u32 %v696, 65535
      %v698 = vshrl.u32 %v696, 16
      %v699 = vcvt.s32.f32 %v697
      %v700 = vcvt.s32.f32 %v698
      %701 = vadd.xlane.f32.xlu0 %v699
      %v702 = vpop.xlane.xlu0 %701
      %703 = vadd.xlane.f32.xlu0 %v700
      %v704 = vpop.xlane.xlu0 %703
      %v705 = vcvt.f32.s32 %v702
      %v706 = vcvt.f32.s32 %v704
      %v707 = vshll.u32 %v706, 16
      %v708 = vadd.s32 %v707, %v705
      %v709 = vrot.slane %v708, 4
      %v710 = vadd.s32 %v708, %v709
      %v711 = vrot.slane %v710, 2
      %v712 = vadd.s32 %v710, %v711
      %v713 = vrot.slane %v712, 1
      %v714 = vadd.s32 %v712, %v713
      %s715 = vtos %v714
      %p716 = scmp.lt.s32.totalorder %s715, %s73
      %s717 = scalar_select %p716, %s690, %s689
      %s718 = sor.u32 %s717, 128
      %v719 = vstv %s718
      %vm720 = vcmp.lt.s32.totalorder %v74, %v719
      %vm721 = vcmp.lt.s32.totalorder %v75, %v719
      %v722 = vsel %vm720, 1, 0
      %v723 = vsel %vm721, 1, 0
      %v724 = vadd.s32 %v722, %v723
      %v725 = vand.u32 %v724, 65535
      %v726 = vshrl.u32 %v724, 16
      %v727 = vcvt.s32.f32 %v725
      %v728 = vcvt.s32.f32 %v726
      %729 = vadd.xlane.f32.xlu0 %v727
      %v730 = vpop.xlane.xlu0 %729
      %731 = vadd.xlane.f32.xlu0 %v728
      %v732 = vpop.xlane.xlu0 %731
      %v733 = vcvt.f32.s32 %v730
      %v734 = vcvt.f32.s32 %v732
      %v735 = vshll.u32 %v734, 16
      %v736 = vadd.s32 %v735, %v733
      %v737 = vrot.slane %v736, 4
      %v738 = vadd.s32 %v736, %v737
      %v739 = vrot.slane %v738, 2
      %v740 = vadd.s32 %v738, %v739
      %v741 = vrot.slane %v740, 1
      %v742 = vadd.s32 %v740, %v741
      %s743 = vtos %v742
      %p744 = scmp.lt.s32.totalorder %s743, %s73
      %s745 = scalar_select %p744, %s718, %s717
      %s746 = sor.u32 %s745, 64
      %v747 = vstv %s746
      %vm748 = vcmp.lt.s32.totalorder %v74, %v747
      %vm749 = vcmp.lt.s32.totalorder %v75, %v747
      %v750 = vsel %vm748, 1, 0
      %v751 = vsel %vm749, 1, 0
      %v752 = vadd.s32 %v750, %v751
      %v753 = vand.u32 %v752, 65535
      %v754 = vshrl.u32 %v752, 16
      %v755 = vcvt.s32.f32 %v753
      %v756 = vcvt.s32.f32 %v754
      %757 = vadd.xlane.f32.xlu0 %v755
      %v758 = vpop.xlane.xlu0 %757
      %759 = vadd.xlane.f32.xlu0 %v756
      %v760 = vpop.xlane.xlu0 %759
      %v761 = vcvt.f32.s32 %v758
      %v762 = vcvt.f32.s32 %v760
      %v763 = vshll.u32 %v762, 16
      %v764 = vadd.s32 %v763, %v761
      %v765 = vrot.slane %v764, 4
      %v766 = vadd.s32 %v764, %v765
      %v767 = vrot.slane %v766, 2
      %v768 = vadd.s32 %v766, %v767
      %v769 = vrot.slane %v768, 1
      %v770 = vadd.s32 %v768, %v769
      %s771 = vtos %v770
      %p772 = scmp.lt.s32.totalorder %s771, %s73
      %s773 = scalar_select %p772, %s746, %s745
      %s774 = sor.u32 %s773, 32
      %v775 = vstv %s774
      %vm776 = vcmp.lt.s32.totalorder %v74, %v775
      %vm777 = vcmp.lt.s32.totalorder %v75, %v775
      %v778 = vsel %vm776, 1, 0
      %v779 = vsel %vm777, 1, 0
      %v780 = vadd.s32 %v778, %v779
      %v781 = vand.u32 %v780, 65535
      %v782 = vshrl.u32 %v780, 16
      %v783 = vcvt.s32.f32 %v781
      %v784 = vcvt.s32.f32 %v782
      %785 = vadd.xlane.f32.xlu0 %v783
      %v786 = vpop.xlane.xlu0 %785
      %787 = vadd.xlane.f32.xlu0 %v784
      %v788 = vpop.xlane.xlu0 %787
      %v789 = vcvt.f32.s32 %v786
      %v790 = vcvt.f32.s32 %v788
      %v791 = vshll.u32 %v790, 16
      %v792 = vadd.s32 %v791, %v789
      %v793 = vrot.slane %v792, 4
      %v794 = vadd.s32 %v792, %v793
      %v795 = vrot.slane %v794, 2
      %v796 = vadd.s32 %v794, %v795
      %v797 = vrot.slane %v796, 1
      %v798 = vadd.s32 %v796, %v797
      %s799 = vtos %v798
      %p800 = scmp.lt.s32.totalorder %s799, %s73
      %s801 = scalar_select %p800, %s774, %s773
      %s802 = sor.u32 %s801, 16
      %v803 = vstv %s802
      %vm804 = vcmp.lt.s32.totalorder %v74, %v803
      %vm805 = vcmp.lt.s32.totalorder %v75, %v803
      %v806 = vsel %vm804, 1, 0
      %v807 = vsel %vm805, 1, 0
      %v808 = vadd.s32 %v806, %v807
      %v809 = vand.u32 %v808, 65535
      %v810 = vshrl.u32 %v808, 16
      %v811 = vcvt.s32.f32 %v809
      %v812 = vcvt.s32.f32 %v810
      %813 = vadd.xlane.f32.xlu0 %v811
      %v814 = vpop.xlane.xlu0 %813
      %815 = vadd.xlane.f32.xlu0 %v812
      %v816 = vpop.xlane.xlu0 %815
      %v817 = vcvt.f32.s32 %v814
      %v818 = vcvt.f32.s32 %v816
      %v819 = vshll.u32 %v818, 16
      %v820 = vadd.s32 %v819, %v817
      %v821 = vrot.slane %v820, 4
      %v822 = vadd.s32 %v820, %v821
      %v823 = vrot.slane %v822, 2
      %v824 = vadd.s32 %v822, %v823
      %v825 = vrot.slane %v824, 1
      %v826 = vadd.s32 %v824, %v825
      %s827 = vtos %v826
      %p828 = scmp.lt.s32.totalorder %s827, %s73
      %s829 = scalar_select %p828, %s802, %s801
      %s830 = sor.u32 %s829, 8
      %v831 = vstv %s830
      %vm832 = vcmp.lt.s32.totalorder %v74, %v831
      %vm833 = vcmp.lt.s32.totalorder %v75, %v831
      %v834 = vsel %vm832, 1, 0
      %v835 = vsel %vm833, 1, 0
      %v836 = vadd.s32 %v834, %v835
      %v837 = vand.u32 %v836, 65535
      %v838 = vshrl.u32 %v836, 16
      %v839 = vcvt.s32.f32 %v837
      %v840 = vcvt.s32.f32 %v838
      %841 = vadd.xlane.f32.xlu0 %v839
      %v842 = vpop.xlane.xlu0 %841
      %843 = vadd.xlane.f32.xlu0 %v840
      %v844 = vpop.xlane.xlu0 %843
      %v845 = vcvt.f32.s32 %v842
      %v846 = vcvt.f32.s32 %v844
      %v847 = vshll.u32 %v846, 16
      %v848 = vadd.s32 %v847, %v845
      %v849 = vrot.slane %v848, 4
      %v850 = vadd.s32 %v848, %v849
      %v851 = vrot.slane %v850, 2
      %v852 = vadd.s32 %v850, %v851
      %v853 = vrot.slane %v852, 1
      %v854 = vadd.s32 %v852, %v853
      %s855 = vtos %v854
      %p856 = scmp.lt.s32.totalorder %s855, %s73
      %s857 = scalar_select %p856, %s830, %s829
      %s858 = sor.u32 %s857, 4
      %v859 = vstv %s858
      %vm860 = vcmp.lt.s32.totalorder %v74, %v859
      %vm861 = vcmp.lt.s32.totalorder %v75, %v859
      %v862 = vsel %vm860, 1, 0
      %v863 = vsel %vm861, 1, 0
      %v864 = vadd.s32 %v862, %v863
      %v865 = vand.u32 %v864, 65535
      %v866 = vshrl.u32 %v864, 16
      %v867 = vcvt.s32.f32 %v865
      %v868 = vcvt.s32.f32 %v866
      %869 = vadd.xlane.f32.xlu0 %v867
      %v870 = vpop.xlane.xlu0 %869
      %871 = vadd.xlane.f32.xlu0 %v868
      %v872 = vpop.xlane.xlu0 %871
      %v873 = vcvt.f32.s32 %v870
      %v874 = vcvt.f32.s32 %v872
      %v875 = vshll.u32 %v874, 16
      %v876 = vadd.s32 %v875, %v873
      %v877 = vrot.slane %v876, 4
      %v878 = vadd.s32 %v876, %v877
      %v879 = vrot.slane %v878, 2
      %v880 = vadd.s32 %v878, %v879
      %v881 = vrot.slane %v880, 1
      %v882 = vadd.s32 %v880, %v881
      %s883 = vtos %v882
      %p884 = scmp.lt.s32.totalorder %s883, %s73
      %s885 = scalar_select %p884, %s858, %s857
      %s886 = sor.u32 %s885, 2
      %v887 = vstv %s886
      %vm888 = vcmp.lt.s32.totalorder %v74, %v887
      %vm889 = vcmp.lt.s32.totalorder %v75, %v887
      %v890 = vsel %vm888, 1, 0
      %v891 = vsel %vm889, 1, 0
      %v892 = vadd.s32 %v890, %v891
      %v893 = vand.u32 %v892, 65535
      %v894 = vshrl.u32 %v892, 16
      %v895 = vcvt.s32.f32 %v893
      %v896 = vcvt.s32.f32 %v894
      %897 = vadd.xlane.f32.xlu0 %v895
      %v898 = vpop.xlane.xlu0 %897
      %899 = vadd.xlane.f32.xlu0 %v896
      %v900 = vpop.xlane.xlu0 %899
      %v901 = vcvt.f32.s32 %v898
      %v902 = vcvt.f32.s32 %v900
      %v903 = vshll.u32 %v902, 16
      %v904 = vadd.s32 %v903, %v901
      %v905 = vrot.slane %v904, 4
      %v906 = vadd.s32 %v904, %v905
      %v907 = vrot.slane %v906, 2
      %v908 = vadd.s32 %v906, %v907
      %v909 = vrot.slane %v908, 1
      %v910 = vadd.s32 %v908, %v909
      %s911 = vtos %v910
      %p912 = scmp.lt.s32.totalorder %s911, %s73
      %s913 = scalar_select %p912, %s886, %s885
      %s914 = sor.u32 %s913, 1
      %v915 = vstv %s914
      %vm916 = vcmp.lt.s32.totalorder %v74, %v915
      %vm917 = vcmp.lt.s32.totalorder %v75, %v915
      %v918 = vsel %vm916, 1, 0
      %v919 = vsel %vm917, 1, 0
      %v920 = vadd.s32 %v918, %v919
      %v921 = vand.u32 %v920, 65535
      %v922 = vshrl.u32 %v920, 16
      %v923 = vcvt.s32.f32 %v921
      %v924 = vcvt.s32.f32 %v922
      %925 = vadd.xlane.f32.xlu0 %v923
      %v926 = vpop.xlane.xlu0 %925
      %927 = vadd.xlane.f32.xlu0 %v924
      %v928 = vpop.xlane.xlu0 %927
      %v929 = vcvt.f32.s32 %v926
      %v930 = vcvt.f32.s32 %v928
      %v931 = vshll.u32 %v930, 16
      %v932 = vadd.s32 %v931, %v929
      %v933 = vrot.slane %v932, 4
      %v934 = vadd.s32 %v932, %v933
      %v935 = vrot.slane %v934, 2
      %v936 = vadd.s32 %v934, %v935
      %v937 = vrot.slane %v936, 1
      %v938 = vadd.s32 %v936, %v937
      %s939 = vtos %v938
      %p940 = scmp.lt.s32.totalorder %s939, %s73
      %s941 = scalar_select %p940, %s914, %s913
      %v942 = vstv %s941
      %s944 = vtos %v942
      %s945 = sld [smem:[#allocation3]]
      %s946 = sld [smem:[#allocation6]]
      %p947 = scmp.eq.s32.totalorder %s946, 0
      %s948 = sld [smem:[#allocation5]]
      %s949 = smul.f32 %s948, 0.9
      %s950 = smul.f32 %s944, 0.1
      %s951 = sadd.f32 %s949, %s950
      %s952 = scalar_select %p947, %s944, %s951
      %s953 = scalar_lea.smem [#allocation12], 0
      %954 = sst [smem:[%s953]] %s952
      %s955 = sld [smem:[#allocation4]]
      %s956 = smul.f32 %s955, 0.9
      %s957 = smul.f32 %s945, 0.1
      %s958 = sadd.f32 %s956, %s957
      %s959 = scalar_select %p947, %s945, %s958
      %s960 = scalar_lea.smem [#allocation11], 0
      %961 = sst [smem:[%s960]] %s959
    $region33: #{tpu_custom_call.1} parent=1 // pred_fallthru
      _
    // Predicated region
    $region34: #{tpu_custom_call.1} parent=1 // pred_check
      _
    $region35: #{tpu_custom_call.1} parent=1 // pred_check_branch
      %963 = sbr.rel (0) target = $region37
    $region36: #{tpu_custom_call.1} parent=1 // pred_region
      %s965 = ssub.s32 16, 16
      %966 = vsyncadd [#allocation10], %s965
      %969 = dma.smem_to_hbm [#allocation11], 16, %s5, [#allocation10]
    $region37: #{tpu_custom_call.1} parent=1 // pred_fallthru
      _
    // Predicated region
    $region38: #{tpu_custom_call.1} parent=1 // pred_check
      _
    $region39: #{tpu_custom_call.1} parent=1 // pred_check_branch
      %971 = sbr.rel (0) target = $region41
    $region40: #{tpu_custom_call.1} parent=1 // pred_region
      %s973 = ssub.s32 16, 16
      %974 = vsyncadd [#allocation13], %s973
      %977 = dma.smem_to_hbm [#allocation12], 16, %s6, [#allocation13]
    $region41: #{tpu_custom_call.1} parent=1 // pred_fallthru
      _
    // Predicated region
    $region42: #{tpu_custom_call.1} parent=1 // pred_check
      _
    $region43: #{tpu_custom_call.1} parent=1 // pred_check_branch
      %979 = sbr.rel (0) target = $region45
    $region44: #{tpu_custom_call.1} parent=1 // pred_region
      %980 = dma.done [#allocation10], 16
    $region45: #{tpu_custom_call.1} parent=1 // pred_fallthru
      _
    // Predicated region
    $region46: #{tpu_custom_call.1} parent=1 // pred_check
      _
    $region47: #{tpu_custom_call.1} parent=1 // pred_check_branch
      %982 = sbr.rel (0) target = $region49
    $region48: #{tpu_custom_call.1} parent=1 // pred_region
      %983 = dma.done [#allocation13], 16
    $region49: #{tpu_custom_call.1} parent=1 // pred_fallthru
      _
    %984 = sfence
    %985 = vsyncpa [#allocation9], 1
    %986 = vsyncpa [#allocation10], 1
    %987 = vsyncpa [#allocation13], 1

</llo_original>
